<compile_context>
chip_gen: v6e
topology: v6e:2x2x1
jax: 0.10.0
libtpu: 0.0.40
codegen_flags: <defaults>
</compile_context>

<pallas_src>
import jax
import jax.numpy as jnp
from jax.experimental import pallas as pl
from jax.experimental.pallas import tpu as pltpu

D_IN, D_H1, D_H2, D_OUT = 28 * 28, 512, 718, 10   # true PyTorch dims
D_H2_P, D_OUT_P = 768, 128                        # lane-aligned (x128) padded dims
NEG_INF = -1e30

_TB_CANDIDATES = (8, 16, 32, 64, 128, 256, 512)   # 512 keeps f32-x working set ~12 MiB


def _round_up(x, m):
    return (x + m - 1) // m * m


def _choose_tb(B):
    """Batch tile: big enough to amortize ~0.35us/grid-step pipeline overhead,
    small enough to bound partial-tile waste, and >=2 tiles at large batch so
    both v7x TensorCores get work under dimension_semantics=("parallel",)."""
    b8 = _round_up(B, 8)
    step_ns, row_ns = 350.0, 4.0          # pipeline step overhead / MXU ns per row
    best_tb, best_cost = 8, None
    for tb in _TB_CANDIDATES:
        if tb > b8:
            break
        tiles = -(-B // tb)
        if B >= 256 and tiles < 2:        # keep both v7x TCs fed at large batch
            continue
        cost = tiles * (step_ns + tb * row_ns)
        if best_cost is None or cost < best_cost:
            best_tb, best_cost = tb, cost
    return best_tb


def mlp_softmax_kernel(x_ref, w1_ref, b1_ref, w2_ref, b2_ref, w3_ref, b3_ref,
                       out_ref):
    # x arrives in f32 at its true K=784; bf16 cast is a free VPU op under the
    # MXU-bound regime and avoids any host-side pad/cast pass over x.
    x = x_ref[...].astype(jnp.bfloat16)

    # Layer 1: (TB, 784) @ (784, 512) on the MXU, f32 accumulate.
    h1 = jnp.dot(x, w1_ref[...], preferred_element_type=jnp.float32)
    h1 = jnp.maximum(h1 + b1_ref[...], 0.0).astype(jnp.bfloat16)

    # Layer 2: (TB, 512) @ (512, 768); padded output cols are exactly 0.
    h2 = jnp.dot(h1, w2_ref[...], preferred_element_type=jnp.float32)
    h2 = jnp.maximum(h2 + b2_ref[...], 0.0).astype(jnp.bfloat16)

    # Layer 3: (TB, 768) @ (768, 128); padded lanes carry bias -1e30 -> exp()==0.
    logits = jnp.dot(h2, w3_ref[...], preferred_element_type=jnp.float32)
    logits = logits + b3_ref[...]

    # Softmax over the lane-dense padded feature axis, all in f32.
    m = jnp.max(logits, axis=-1, keepdims=True)
    e = jnp.exp(logits - m)
    s = jnp.sum(e, axis=-1, keepdims=True)
    out_ref[...] = (e * pl.reciprocal(s, approx=False)).astype(out_ref.dtype)


def linear_network_forward(x, packed_params):
    """x: (B, 1, 28, 28) float32 NCHW. Returns (B, 10) softmax probabilities."""
    w1, b1, w2, b2, w3, b3 = packed_params
    B = x.shape[0]

    TB = _choose_tb(B)
    num_tiles = -(-B // TB)

    x_flat = x.reshape(B, -1)                    # nn.Flatten(); free reshape, stays f32

    flops = 2 * num_tiles * TB * (D_IN * D_H1 + D_H1 * D_H2_P + D_H2_P * D_OUT_P)
    bytes_accessed = (
        x_flat.size * 4 + B * D_OUT_P * 4
        + sum(int(p.size) * p.dtype.itemsize for p in packed_params)
    )

    out = pl.pallas_call(
        mlp_softmax_kernel,
        out_shape=jax.ShapeDtypeStruct((B, D_OUT_P), jnp.float32),
        grid=(num_tiles,),
        in_specs=[
            # x: batch-tiled; last dim is the full 784 extent (legal block shape).
            pl.BlockSpec((TB, D_IN), lambda i: (i, 0)),
            # Weights/biases: constant block index -> DMA'd once, VMEM-resident.
            pl.BlockSpec((D_IN, D_H1), lambda i: (0, 0)),
            pl.BlockSpec((1, D_H1), lambda i: (0, 0)),
            pl.BlockSpec((D_H1, D_H2_P), lambda i: (0, 0)),
            pl.BlockSpec((1, D_H2_P), lambda i: (0, 0)),
            pl.BlockSpec((D_H2_P, D_OUT_P), lambda i: (0, 0)),
            pl.BlockSpec((1, D_OUT_P), lambda i: (0, 0)),
        ],
        out_specs=pl.BlockSpec((TB, D_OUT_P), lambda i: (i, 0)),
        compiler_params=pltpu.CompilerParams(
            dimension_semantics=("parallel",),   # shards batch tiles across v7x's 2 TCs
            vmem_limit_bytes=32 << 20,           # v7x-safe; working set ~12 MiB at TB=512
        ),
        cost_estimate=pl.CostEstimate(
            flops=flops,
            transcendentals=B * D_OUT_P,
            bytes_accessed=bytes_accessed,
        ),
    )(x_flat, w1, b1, w2, b2, w3, b3)

    return out[:B, :D_OUT]


def init_params(key):
    """PyTorch-nn.Linear-like init at the true (unpadded) shapes, f32."""
    ks = jax.random.split(key, 6)

    def linear(kw, kb, fan_in, fan_out):
        bound = 1.0 / jnp.sqrt(fan_in)
        w = jax.random.uniform(kw, (fan_in, fan_out), jnp.float32, -bound, bound)
        b = jax.random.uniform(kb, (1, fan_out), jnp.float32, -bound, bound)
        return w, b

    w1, b1 = linear(ks[0], ks[1], D_IN, D_H1)
    w2, b2 = linear(ks[2], ks[3], D_H1, D_H2)
    w3, b3 = linear(ks[4], ks[5], D_H2, D_OUT)
    return (w1, b1, w2, b2, w3, b3)


def pack_params(params):
    """Zero-pad ragged feature dims to lane multiples and cast weights to bf16.

    Padded weight rows/cols are zero (contribute nothing to valid outputs);
    padded lanes of b3 are -1e30 so softmax over 128 lanes == softmax over 10.
    The K=784 dim of layer 1 is NOT padded (matches the unpadded x block).
    """
    w1, b1, w2, b2, w3, b3 = params
    w1p = w1.astype(jnp.bfloat16)                               # (784, 512)
    b1p = b1                                                    # (1, 512) f32
    w2p = jnp.pad(w2, ((0, 0), (0, D_H2_P - D_H2))).astype(jnp.bfloat16)
    b2p = jnp.pad(b2, ((0, 0), (0, D_H2_P - D_H2)))             # pad cols = 0
    w3p = jnp.pad(w3, ((0, D_H2_P - D_H2), (0, D_OUT_P - D_OUT))
                  ).astype(jnp.bfloat16)
    b3p = jnp.pad(b3, ((0, 0), (0, D_OUT_P - D_OUT)), constant_values=NEG_INF)
    return (w1p, b1p, w2p, b2p, w3p, b3p)


def reference_forward(x, params):
    w1, b1, w2, b2, w3, b3 = params
    h = x.reshape(x.shape[0], -1)
    h = jnp.maximum(h @ w1 + b1, 0.0)
    h = jnp.maximum(h @ w2 + b2, 0.0)
    return jax.nn.softmax(h @ w3 + b3, axis=-1)


if __name__ == "__main__":
    key = jax.random.PRNGKey(0)
    k_x, k_p = jax.random.split(key)

    B = 2
    x = jax.random.normal(k_x, (B, 1, 28, 28), dtype=jnp.float32)  # NCHW
    params = init_params(k_p)
    packed = pack_params(params)

    out = jax.jit(linear_network_forward)(x, packed)
    out = jax.block_until_ready(out)

    ref = reference_forward(x, params)
    assert out.shape == (B, D_OUT)
    assert jnp.allclose(jnp.sum(out, axis=-1), 1.0, atol=1e-4)
    # bf16 weights/activations on the MXU -> relaxed tolerance vs. f32 reference
    # (intentional; accumulation and all elementwise math stay f32).
    assert jnp.allclose(out, ref, atol=2e-2, rtol=2e-2)

    print("KERNEL_OK")
</pallas_src>

<mosaic_0001>
module attributes {stable_mosaic.version = 11 : i64} {
  func.func @mlp_softmax_kernel(%arg0: i32, %arg1: memref<8x784xf32, #tpu.memory_space<vmem>>, %arg2: memref<784x512xbf16, #tpu.memory_space<vmem>>, %arg3: memref<1x512xf32, #tpu.memory_space<vmem>>, %arg4: memref<512x768xbf16, #tpu.memory_space<vmem>>, %arg5: memref<1x768xf32, #tpu.memory_space<vmem>>, %arg6: memref<768x128xbf16, #tpu.memory_space<vmem>>, %arg7: memref<1x128xf32, #tpu.memory_space<vmem>>, %arg8: memref<8x128xf32, #tpu.memory_space<vmem>>) attributes {dimension_semantics = [#tpu.dimension_semantics<parallel>], iteration_bounds = array<i64: 1>, scalar_prefetch = 0 : i64, scratch_operands = 0 : i64, tpu.core_type = #tpu.core_type<tc>, window_params = [{transform_indices = @transform_0, window_bounds = array<i64: 8, 784>}, {pipeline_mode = #tpu.pipeline_mode<synchronous>, transform_indices = @transform_1, window_bounds = array<i64: 784, 512>}, {pipeline_mode = #tpu.pipeline_mode<synchronous>, transform_indices = @transform_2, window_bounds = array<i64: 1, 512>}, {pipeline_mode = #tpu.pipeline_mode<synchronous>, transform_indices = @transform_3, window_bounds = array<i64: 512, 768>}, {pipeline_mode = #tpu.pipeline_mode<synchronous>, transform_indices = @transform_4, window_bounds = array<i64: 1, 768>}, {pipeline_mode = #tpu.pipeline_mode<synchronous>, transform_indices = @transform_5, window_bounds = array<i64: 768, 128>}, {pipeline_mode = #tpu.pipeline_mode<synchronous>, transform_indices = @transform_6, window_bounds = array<i64: 1, 128>}, {transform_indices = @transform_7, window_bounds = array<i64: 8, 128>}]} {
    %c0 = arith.constant 0 : index
    %c0_0 = arith.constant 0 : index
    %0 = vector.load %arg1[%c0, %c0_0] : memref<8x784xf32, #tpu.memory_space<vmem>>, vector<8x784xf32>
    %1 = arith.truncf %0 : vector<8x784xf32> to vector<8x784xbf16>
    %c0_1 = arith.constant 0 : index
    %c0_2 = arith.constant 0 : index
    %2 = vector.load %arg2[%c0_1, %c0_2] : memref<784x512xbf16, #tpu.memory_space<vmem>>, vector<784x512xbf16>
    %cst = arith.constant dense<0.000000e+00> : vector<8x512xf32>
    %3 = tpu.matmul %1, %2, %cst {dimension_numbers = #tpu.dot_dimension_numbers<[1], [0], [0], [1], [0, 0, 1, 1], [], []>} : vector<8x784xbf16>, vector<784x512xbf16>, vector<8x512xf32> -> vector<8x512xf32>
    %c0_3 = arith.constant 0 : index
    %c0_4 = arith.constant 0 : index
    %4 = vector.load %arg3[%c0_3, %c0_4] : memref<1x512xf32, #tpu.memory_space<vmem>>, vector<1x512xf32>
    %5 = vector.broadcast %4 : vector<1x512xf32> to vector<8x512xf32>
    %6 = arith.addf %3, %5 : vector<8x512xf32>
    %cst_5 = arith.constant 0.000000e+00 : f32
    %7 = vector.broadcast %cst_5 : f32 to vector<8x512xf32>
    %8 = arith.maximumf %6, %7 : vector<8x512xf32>
    %9 = arith.truncf %8 : vector<8x512xf32> to vector<8x512xbf16>
    %c0_6 = arith.constant 0 : index
    %c0_7 = arith.constant 0 : index
    %10 = vector.load %arg4[%c0_6, %c0_7] : memref<512x768xbf16, #tpu.memory_space<vmem>>, vector<512x768xbf16>
    %cst_8 = arith.constant dense<0.000000e+00> : vector<8x768xf32>
    %11 = tpu.matmul %9, %10, %cst_8 {dimension_numbers = #tpu.dot_dimension_numbers<[1], [0], [0], [1], [0, 0, 1, 1], [], []>} : vector<8x512xbf16>, vector<512x768xbf16>, vector<8x768xf32> -> vector<8x768xf32>
    %c0_9 = arith.constant 0 : index
    %c0_10 = arith.constant 0 : index
    %12 = vector.load %arg5[%c0_9, %c0_10] : memref<1x768xf32, #tpu.memory_space<vmem>>, vector<1x768xf32>
    %13 = vector.broadcast %12 : vector<1x768xf32> to vector<8x768xf32>
    %14 = arith.addf %11, %13 : vector<8x768xf32>
    %cst_11 = arith.constant 0.000000e+00 : f32
    %15 = vector.broadcast %cst_11 : f32 to vector<8x768xf32>
    %16 = arith.maximumf %14, %15 : vector<8x768xf32>
    %17 = arith.truncf %16 : vector<8x768xf32> to vector<8x768xbf16>
    %c0_12 = arith.constant 0 : index
    %c0_13 = arith.constant 0 : index
    %18 = vector.load %arg6[%c0_12, %c0_13] : memref<768x128xbf16, #tpu.memory_space<vmem>>, vector<768x128xbf16>
    %cst_14 = arith.constant dense<0.000000e+00> : vector<8x128xf32>
    %19 = tpu.matmul %17, %18, %cst_14 {dimension_numbers = #tpu.dot_dimension_numbers<[1], [0], [0], [1], [0, 0, 1, 1], [], []>} : vector<8x768xbf16>, vector<768x128xbf16>, vector<8x128xf32> -> vector<8x128xf32>
    %c0_15 = arith.constant 0 : index
    %c0_16 = arith.constant 0 : index
    %20 = vector.load %arg7[%c0_15, %c0_16] : memref<1x128xf32, #tpu.memory_space<vmem>>, vector<1x128xf32>
    %21 = vector.broadcast %20 : vector<1x128xf32> to vector<8x128xf32>
    %22 = arith.addf %19, %21 : vector<8x128xf32>
    %cst_17 = arith.constant dense<0xFF800000> : vector<8xf32>
    %23 = vector.multi_reduction <maximumf>, %22, %cst_17 [1] : vector<8x128xf32> to vector<8xf32>
    %24 = vector.shape_cast %23 : vector<8xf32> to vector<8x1xf32>
    %25 = vector.broadcast %24 : vector<8x1xf32> to vector<8x128xf32>
    %26 = arith.subf %22, %25 : vector<8x128xf32>
    %27 = math.exp %26 : vector<8x128xf32>
    %cst_18 = arith.constant dense<0.000000e+00> : vector<8xf32>
    %28 = vector.multi_reduction <add>, %27, %cst_18 [1] : vector<8x128xf32> to vector<8xf32>
    %29 = vector.shape_cast %28 : vector<8xf32> to vector<8x1xf32>
    %30 = tpu.reciprocal %29 : vector<8x1xf32> -> vector<8x1xf32>
    %31 = vector.broadcast %30 : vector<8x1xf32> to vector<8x128xf32>
    %32 = arith.mulf %27, %31 : vector<8x128xf32>
    %c0_19 = arith.constant 0 : index
    %c0_20 = arith.constant 0 : index
    %33 = vector.load %arg8[%c0_19, %c0_20] : memref<8x128xf32, #tpu.memory_space<vmem>>, vector<8x128xf32>
    tpu.vector_store %arg8[%c0_19, %c0_20], %32 {strides = array<i32>} : memref<8x128xf32, #tpu.memory_space<vmem>>, vector<8x128xf32>,
    return
  }
  func.func @transform_0(%arg0: i32) -> (i32, i32) {
    %c0_i32 = arith.constant 0 : i32
    %c0_i32_0 = arith.constant 0 : i32
    return %arg0, %c0_i32 : i32, i32
  }
  func.func @transform_1(%arg0: i32) -> (i32, i32) {
    %c0_i32 = arith.constant 0 : i32
    %c0_i32_0 = arith.constant 0 : i32
    %c0_i32_1 = arith.constant 0 : i32
    return %c0_i32, %c0_i32_0 : i32, i32
  }
  func.func @transform_2(%arg0: i32) -> (i32, i32) {
    %c0_i32 = arith.constant 0 : i32
    %c0_i32_0 = arith.constant 0 : i32
    %c0_i32_1 = arith.constant 0 : i32
    return %c0_i32, %c0_i32_0 : i32, i32
  }
  func.func @transform_3(%arg0: i32) -> (i32, i32) {
    %c0_i32 = arith.constant 0 : i32
    %c0_i32_0 = arith.constant 0 : i32
    %c0_i32_1 = arith.constant 0 : i32
    return %c0_i32, %c0_i32_0 : i32, i32
  }
  func.func @transform_4(%arg0: i32) -> (i32, i32) {
    %c0_i32 = arith.constant 0 : i32
    %c0_i32_0 = arith.constant 0 : i32
    %c0_i32_1 = arith.constant 0 : i32
    return %c0_i32, %c0_i32_0 : i32, i32
  }
  func.func @transform_5(%arg0: i32) -> (i32, i32) {
    %c0_i32 = arith.constant 0 : i32
    %c0_i32_0 = arith.constant 0 : i32
    %c0_i32_1 = arith.constant 0 : i32
    return %c0_i32, %c0_i32_0 : i32, i32
  }
  func.func @transform_6(%arg0: i32) -> (i32, i32) {
    %c0_i32 = arith.constant 0 : i32
    %c0_i32_0 = arith.constant 0 : i32
    %c0_i32_1 = arith.constant 0 : i32
    return %c0_i32, %c0_i32_0 : i32, i32
  }
  func.func @transform_7(%arg0: i32) -> (i32, i32) {
    %c0_i32 = arith.constant 0 : i32
    %c0_i32_0 = arith.constant 0 : i32
    return %arg0, %c0_i32 : i32, i32
  }
}

</mosaic_0001>

<llo_original>
// kernel: linear_network_forward.1
$region0: #{linear_network_forward.1}
  #allocation0 [shape = 'u32[]', space=smem, size = 0x4, offset = 0x4, fixed_abs, tag = 'smem constant byte address 0x4 - core index']
  #allocation1 [shape = 'u32[144,128]{1,0:T(1,128)}', space=vmem, size = 0x12000, scoped, tag = 'internal scratch']
  %s0 = inlined_call_operand.vmem [shape: f32[2,784], index: 0, kind: input, shape index: {}]
  %s1 = inlined_call_operand.hbm [shape: bf16[784,512], index: 1, kind: input, shape index: {}]
  %s2 = inlined_call_operand.vmem [shape: f32[1,512], index: 2, kind: input, shape index: {}]
  %s3 = inlined_call_operand.hbm [shape: bf16[512,768], index: 3, kind: input, shape index: {}]
  %s4 = inlined_call_operand.vmem [shape: f32[1,768], index: 4, kind: input, shape index: {}]
  %s5 = inlined_call_operand.hbm [shape: bf16[768,128], index: 5, kind: input, shape index: {}]
  %s6 = inlined_call_operand.vmem [shape: f32[1,128], index: 6, kind: input, shape index: {}]
  %s7 = inlined_call_operand.hbm [shape: f32[2,128], index: 7, kind: output, shape index: {}]
  %s8 = sld [smem:[#allocation0]]
  $region50: #{linear_network_forward.1} parent=0
    _
  %s10 = ssub.s32 1, %s8
  %s11 = scalar_select 0, %s10, %s8
  $region1: #{linear_network_forward.1} parent=0
    #allocation2 [shape = 'u8[802816]{0}', space=vmem, size = 0xc4000, scoped, tag = 'input window, operand 1, single buffered']
    #allocation3 [shape = 's32[1]{0}', space=sflag, size = 0x4, scoped, tag = 'scoped memory for linear_network_forward.1']
    #allocation4 [shape = 's32[1]{0}', space=sflag, size = 0x4, scoped, tag = 'scoped memory for linear_network_forward.1']
    #allocation5 [shape = 'u8[786432]{0}', space=vmem, size = 0xc0000, scoped, tag = 'input window, operand 3, single buffered']
    #allocation6 [shape = 's32[1]{0}', space=sflag, size = 0x4, scoped, tag = 'scoped memory for linear_network_forward.1']
    #allocation7 [shape = 'u8[196608]{0}', space=vmem, size = 0x30000, scoped, tag = 'input window, operand 5, single buffered']
    #allocation8 [shape = 'u8[4096]{0}', space=vmem, size = 0x1000, scoped, tag = 'output window, operand 0, single buffered']
    %12 = vsyncpa [#allocation3], 0
    %13 = vsyncpa [#allocation6], 0
    %14 = vsyncpa [#allocation4], 0
    // Predicated region
    $region2: #{linear_network_forward.1} parent=1 // pred_check
      _
    $region3: #{linear_network_forward.1} parent=1 // pred_check_branch
      %16 = sbr.rel (0) target = $region5
    $region4: #{linear_network_forward.1} parent=1 // pred_region
      _
    $region5: #{linear_network_forward.1} parent=1 // pred_fallthru
      _
    // Predicated region
    $region6: #{linear_network_forward.1} parent=1 // pred_check
      _
    $region7: #{linear_network_forward.1} parent=1 // pred_check_branch
      %18 = sbr.rel (0) target = $region9
    $region8: #{linear_network_forward.1} parent=1 // pred_region
      %s20 = ssub.s32 25088, 25088
      %21 = vsyncadd [#allocation3], %s20
      %s22 = sshll.u32 [#allocation2], 4
      %s23 = int_to_ptr.vmem [resolvable:$true] %s22
      %28 = dma.hbm_to_vmem [thread:$0]  %s1, 25088, %s23, [#allocation3], 256, 256, 16
    $region9: #{linear_network_forward.1} parent=1 // pred_fallthru
      _
    // Predicated region
    $region10: #{linear_network_forward.1} parent=1 // pred_check
      _
    $region11: #{linear_network_forward.1} parent=1 // pred_check_branch
      %30 = sbr.rel (0) target = $region13
    $region12: #{linear_network_forward.1} parent=1 // pred_region
      _
    $region13: #{linear_network_forward.1} parent=1 // pred_fallthru
      _
    // Predicated region
    $region14: #{linear_network_forward.1} parent=1 // pred_check
      _
    $region15: #{linear_network_forward.1} parent=1 // pred_check_branch
      %32 = sbr.rel (0) target = $region17
    $region16: #{linear_network_forward.1} parent=1 // pred_region
      %s34 = ssub.s32 24576, 24576
      %35 = vsyncadd [#allocation6], %s34
      %s36 = sshll.u32 [#allocation5], 4
      %s37 = int_to_ptr.vmem [resolvable:$true] %s36
      %42 = dma.hbm_to_vmem [thread:$0]  %s3, 24576, %s37, [#allocation6], 384, 384, 24
    $region17: #{linear_network_forward.1} parent=1 // pred_fallthru
      _
    // Predicated region
    $region18: #{linear_network_forward.1} parent=1 // pred_check
      _
    $region19: #{linear_network_forward.1} parent=1 // pred_check_branch
      %44 = sbr.rel (0) target = $region21
    $region20: #{linear_network_forward.1} parent=1 // pred_region
      _
    $region21: #{linear_network_forward.1} parent=1 // pred_fallthru
      _
    // Predicated region
    $region22: #{linear_network_forward.1} parent=1 // pred_check
      _
    $region23: #{linear_network_forward.1} parent=1 // pred_check_branch
      %46 = sbr.rel (0) target = $region25
    $region24: #{linear_network_forward.1} parent=1 // pred_region
      %s48 = ssub.s32 6144, 6144
      %49 = vsyncadd [#allocation6], %s48
      %s50 = sshll.u32 [#allocation7], 4
      %s51 = int_to_ptr.vmem [resolvable:$true] %s50
      %56 = dma.hbm_to_vmem [thread:$0]  %s5, 6144, %s51, [#allocation6], 64, 64, 4
    $region25: #{linear_network_forward.1} parent=1 // pred_fallthru
      _
    // Predicated region
    $region26: #{linear_network_forward.1} parent=1 // pred_check
      _
    $region27: #{linear_network_forward.1} parent=1 // pred_check_branch
      %58 = sbr.rel (0) target = $region29
    $region28: #{linear_network_forward.1} parent=1 // pred_region
      _
    $region29: #{linear_network_forward.1} parent=1 // pred_fallthru
      _
    // Predicated region
    $region30: #{linear_network_forward.1} parent=1 // pred_check
      _
    $region31: #{linear_network_forward.1} parent=1 // pred_check_branch
      %60 = sbr.rel (0) target = $region33
    $region32: #{linear_network_forward.1} parent=1 // pred_region
      %61 = dma.done [#allocation3], 25088
    $region33: #{linear_network_forward.1} parent=1 // pred_fallthru
      _
    // Predicated region
    $region34: #{linear_network_forward.1} parent=1 // pred_check
      _
    $region35: #{linear_network_forward.1} parent=1 // pred_check_branch
      %63 = sbr.rel (0) target = $region37
    $region36: #{linear_network_forward.1} parent=1 // pred_region
      %64 = dma.done [#allocation6], 24576
    $region37: #{linear_network_forward.1} parent=1 // pred_fallthru
      _
    // Predicated region
    $region38: #{linear_network_forward.1} parent=1 // pred_check
      _
    $region39: #{linear_network_forward.1} parent=1 // pred_check_branch
      %66 = sbr.rel (0) target = $region41
    $region40: #{linear_network_forward.1} parent=1 // pred_region
      %67 = dma.done [#allocation6], 6144
    $region41: #{linear_network_forward.1} parent=1 // pred_fallthru
      _
    %v69 = vld [vmem:[%s0] sm:$0xff]
    %v70 = vld [vmem:[%s0 + $0x8] sm:$0x3f]
    %v71 = vld [vmem:[%s0 + $0xe] sm:$0xff]
    %v72 = vld [vmem:[%s0 + $0x16] sm:$0x3f]
    %v73 = vld [vmem:[%s0 + $0x1c] sm:$0xff]
    %v74 = vld [vmem:[%s0 + $0x24] sm:$0x3f]
    %v75 = vld [vmem:[%s0 + $0x2a] sm:$0xff]
    %v76 = vld [vmem:[%s0 + $0x32] sm:$0x3f]
    %v85 = vcombine.low %v69, %v71
    %v86 = vcombine.high %v69, %v71
    %v87 = vcombine.low %v73, %v75
    %v88 = vcombine.high %v73, %v75
    %v90 = vunpack.c.l.s4 1983009808
    %v91 = vunpack.c.0.s8 %v90
    %v92 = vlaneseq
    %v93 = vshrl.u32 %v92, 7
    %v94 = vsub.s32 %v91, %v93
    %v95 = vrot.slane %v85, %v94
    %v97 = vunpack.c.l.s4 1983009808
    %v98 = vunpack.c.0.s8 %v97
    %v99 = vlaneseq
    %v100 = vshrl.u32 %v99, 7
    %v101 = vsub.s32 %v98, %v100
    %v102 = vrot.slane %v86, %v101
    %v104 = vunpack.c.l.s4 1983009808
    %v105 = vunpack.c.0.s8 %v104
    %v106 = vlaneseq
    %v107 = vshrl.u32 %v106, 7
    %v108 = vsub.s32 %v105, %v107
    %v109 = vrot.slane %v87, %v108
    %v111 = vunpack.c.l.s4 1983009808
    %v112 = vunpack.c.0.s8 %v111
    %v113 = vlaneseq
    %v114 = vshrl.u32 %v113, 7
    %v115 = vsub.s32 %v112, %v114
    %v116 = vrot.slane %v88, %v115
    %v117 = vcombine.low %v95, %v109
    %v118 = vcombine.high %v95, %v109
    %v119 = vcombine.low %v102, %v116
    %v120 = vcombine.high %v102, %v116
    %v121 = vcombine.low %v70, %v72
    %v122 = vcombine.high %v70, %v72
    %v123 = vcombine.low %v74, %v76
    %v124 = vcombine.high %v74, %v76
    %v126 = vunpack.c.l.s4 1983009808
    %v127 = vunpack.c.0.s8 %v126
    %v128 = vlaneseq
    %v129 = vshrl.u32 %v128, 7
    %v130 = vsub.s32 %v127, %v129
    %v131 = vrot.slane %v121, %v130
    %v133 = vunpack.c.l.s4 1983009808
    %v134 = vunpack.c.0.s8 %v133
    %v135 = vlaneseq
    %v136 = vshrl.u32 %v135, 7
    %v137 = vsub.s32 %v134, %v136
    %v138 = vrot.slane %v122, %v137
    %v140 = vunpack.c.l.s4 1983009808
    %v141 = vunpack.c.0.s8 %v140
    %v142 = vlaneseq
    %v143 = vshrl.u32 %v142, 7
    %v144 = vsub.s32 %v141, %v143
    %v145 = vrot.slane %v123, %v144
    %v147 = vunpack.c.l.s4 1983009808
    %v148 = vunpack.c.0.s8 %v147
    %v149 = vlaneseq
    %v150 = vshrl.u32 %v149, 7
    %v151 = vsub.s32 %v148, %v150
    %v152 = vrot.slane %v124, %v151
    %v153 = vcombine.low %v131, %v145
    %v154 = vcombine.high %v131, %v145
    %v155 = vcombine.low %v138, %v152
    %v163 = vpack.c.bf16 %v117, %v117
    %v164 = vpack.c.bf16 %v118, %v118
    %v165 = vpack.c.bf16 %v119, %v119
    %v166 = vpack.c.bf16 %v120, %v120
    %v167 = vpack.c.bf16 %v153, %v153
    %v168 = vpack.c.bf16 %v154, %v154
    %v169 = vpack.c.bf16 %v155, %v155
    %v170 = vld [vmem:[#allocation2] sm:$0xff]
    %v171 = vld [vmem:[#allocation2 + $0x8] sm:$0xff]
    %v172 = vld [vmem:[#allocation2 + $0x10] sm:$0xff]
    %v173 = vld [vmem:[#allocation2 + $0x18] sm:$0xff]
    %v174 = vld [vmem:[#allocation2 + $0x20] sm:$0xff]
    %v175 = vld [vmem:[#allocation2 + $0x28] sm:$0xff]
    %v176 = vld [vmem:[#allocation2 + $0x30] sm:$0xff]
    %v177 = vld [vmem:[#allocation2 + $0x38] sm:$0xff]
    %v178 = vld [vmem:[#allocation2 + $0x40] sm:$0xff]
    %v179 = vld [vmem:[#allocation2 + $0x48] sm:$0xff]
    %v180 = vld [vmem:[#allocation2 + $0x50] sm:$0xff]
    %v181 = vld [vmem:[#allocation2 + $0x58] sm:$0xff]
    %v182 = vld [vmem:[#allocation2 + $0x60] sm:$0xff]
    %v183 = vld [vmem:[#allocation2 + $0x68] sm:$0xff]
    %v184 = vld [vmem:[#allocation2 + $0x70] sm:$0xff]
    %v185 = vld [vmem:[#allocation2 + $0x78] sm:$0xff]
    %v186 = vld [vmem:[#allocation2 + $0x80] sm:$0xff]
    %v187 = vld [vmem:[#allocation2 + $0x88] sm:$0xff]
    %v188 = vld [vmem:[#allocation2 + $0x90] sm:$0xff]
    %v189 = vld [vmem:[#allocation2 + $0x98] sm:$0xff]
    %v190 = vld [vmem:[#allocation2 + $0xa0] sm:$0xff]
    %v191 = vld [vmem:[#allocation2 + $0xa8] sm:$0xff]
    %v192 = vld [vmem:[#allocation2 + $0xb0] sm:$0xff]
    %v193 = vld [vmem:[#allocation2 + $0xb8] sm:$0xff]
    %v194 = vld [vmem:[#allocation2 + $0xc0] sm:$0xff]
    %v195 = vld [vmem:[#allocation2 + $0xc8] sm:$0xff]
    %v196 = vld [vmem:[#allocation2 + $0xd0] sm:$0xff]
    %v197 = vld [vmem:[#allocation2 + $0xd8] sm:$0xff]
    %v198 = vld [vmem:[#allocation2 + $0xe0] sm:$0xff]
    %v199 = vld [vmem:[#allocation2 + $0xe8] sm:$0xff]
    %v200 = vld [vmem:[#allocation2 + $0xf0] sm:$0xff]
    %v201 = vld [vmem:[#allocation2 + $0xf8] sm:$0xff]
    %v202 = vld [vmem:[#allocation2 + $0x100] sm:$0xff]
    %v203 = vld [vmem:[#allocation2 + $0x108] sm:$0xff]
    %v204 = vld [vmem:[#allocation2 + $0x110] sm:$0xff]
    %v205 = vld [vmem:[#allocation2 + $0x118] sm:$0xff]
    %v206 = vld [vmem:[#allocation2 + $0x120] sm:$0xff]
    %v207 = vld [vmem:[#allocation2 + $0x128] sm:$0xff]
    %v208 = vld [vmem:[#allocation2 + $0x130] sm:$0xff]
    %v209 = vld [vmem:[#allocation2 + $0x138] sm:$0xff]
    %v210 = vld [vmem:[#allocation2 + $0x140] sm:$0xff]
    %v211 = vld [vmem:[#allocation2 + $0x148] sm:$0xff]
    %v212 = vld [vmem:[#allocation2 + $0x150] sm:$0xff]
    %v213 = vld [vmem:[#allocation2 + $0x158] sm:$0xff]
    %v214 = vld [vmem:[#allocation2 + $0x160] sm:$0xff]
    %v215 = vld [vmem:[#allocation2 + $0x168] sm:$0xff]
    %v216 = vld [vmem:[#allocation2 + $0x170] sm:$0xff]
    %v217 = vld [vmem:[#allocation2 + $0x178] sm:$0xff]
    %v218 = vld [vmem:[#allocation2 + $0x180] sm:$0xff]
    %v219 = vld [vmem:[#allocation2 + $0x188] sm:$0xff]
    %v220 = vld [vmem:[#allocation2 + $0x190] sm:$0xff]
    %v221 = vld [vmem:[#allocation2 + $0x198] sm:$0xff]
    %v222 = vld [vmem:[#allocation2 + $0x1a0] sm:$0xff]
    %v223 = vld [vmem:[#allocation2 + $0x1a8] sm:$0xff]
    %v224 = vld [vmem:[#allocation2 + $0x1b0] sm:$0xff]
    %v225 = vld [vmem:[#allocation2 + $0x1b8] sm:$0xff]
    %v226 = vld [vmem:[#allocation2 + $0x1c0] sm:$0xff]
    %v227 = vld [vmem:[#allocation2 + $0x1c8] sm:$0xff]
    %v228 = vld [vmem:[#allocation2 + $0x1d0] sm:$0xff]
    %v229 = vld [vmem:[#allocation2 + $0x1d8] sm:$0xff]
    %v230 = vld [vmem:[#allocation2 + $0x1e0] sm:$0xff]
    %v231 = vld [vmem:[#allocation2 + $0x1e8] sm:$0xff]
    %v232 = vld [vmem:[#allocation2 + $0x1f0] sm:$0xff]
    %v233 = vld [vmem:[#allocation2 + $0x1f8] sm:$0xff]
    %v234 = vld [vmem:[#allocation2 + $0x200] sm:$0xff]
    %v235 = vld [vmem:[#allocation2 + $0x208] sm:$0xff]
    %v236 = vld [vmem:[#allocation2 + $0x210] sm:$0xff]
    %v237 = vld [vmem:[#allocation2 + $0x218] sm:$0xff]
    %v238 = vld [vmem:[#allocation2 + $0x220] sm:$0xff]
    %v239 = vld [vmem:[#allocation2 + $0x228] sm:$0xff]
    %v240 = vld [vmem:[#allocation2 + $0x230] sm:$0xff]
    %v241 = vld [vmem:[#allocation2 + $0x238] sm:$0xff]
    %v242 = vld [vmem:[#allocation2 + $0x240] sm:$0xff]
    %v243 = vld [vmem:[#allocation2 + $0x248] sm:$0xff]
    %v244 = vld [vmem:[#allocation2 + $0x250] sm:$0xff]
    %v245 = vld [vmem:[#allocation2 + $0x258] sm:$0xff]
    %v246 = vld [vmem:[#allocation2 + $0x260] sm:$0xff]
    %v247 = vld [vmem:[#allocation2 + $0x268] sm:$0xff]
    %v248 = vld [vmem:[#allocation2 + $0x270] sm:$0xff]
    %v249 = vld [vmem:[#allocation2 + $0x278] sm:$0xff]
    %v250 = vld [vmem:[#allocation2 + $0x280] sm:$0xff]
    %v251 = vld [vmem:[#allocation2 + $0x288] sm:$0xff]
    %v252 = vld [vmem:[#allocation2 + $0x290] sm:$0xff]
    %v253 = vld [vmem:[#allocation2 + $0x298] sm:$0xff]
    %v254 = vld [vmem:[#allocation2 + $0x2a0] sm:$0xff]
    %v255 = vld [vmem:[#allocation2 + $0x2a8] sm:$0xff]
    %v256 = vld [vmem:[#allocation2 + $0x2b0] sm:$0xff]
    %v257 = vld [vmem:[#allocation2 + $0x2b8] sm:$0xff]
    %v258 = vld [vmem:[#allocation2 + $0x2c0] sm:$0xff]
    %v259 = vld [vmem:[#allocation2 + $0x2c8] sm:$0xff]
    %v260 = vld [vmem:[#allocation2 + $0x2d0] sm:$0xff]
    %v261 = vld [vmem:[#allocation2 + $0x2d8] sm:$0xff]
    %v262 = vld [vmem:[#allocation2 + $0x2e0] sm:$0xff]
    %v263 = vld [vmem:[#allocation2 + $0x2e8] sm:$0xff]
    %v264 = vld [vmem:[#allocation2 + $0x2f0] sm:$0xff]
    %v265 = vld [vmem:[#allocation2 + $0x2f8] sm:$0xff]
    %v266 = vld [vmem:[#allocation2 + $0x300] sm:$0xff]
    %v267 = vld [vmem:[#allocation2 + $0x308] sm:$0xff]
    %v268 = vld [vmem:[#allocation2 + $0x310] sm:$0xff]
    %v269 = vld [vmem:[#allocation2 + $0x318] sm:$0xff]
    %v270 = vld [vmem:[#allocation2 + $0x320] sm:$0xff]
    %v271 = vld [vmem:[#allocation2 + $0x328] sm:$0xff]
    %v272 = vld [vmem:[#allocation2 + $0x330] sm:$0xff]
    %v273 = vld [vmem:[#allocation2 + $0x338] sm:$0xff]
    %v274 = vld [vmem:[#allocation2 + $0x340] sm:$0xff]
    %v275 = vld [vmem:[#allocation2 + $0x348] sm:$0xff]
    %v276 = vld [vmem:[#allocation2 + $0x350] sm:$0xff]
    %v277 = vld [vmem:[#allocation2 + $0x358] sm:$0xff]
    %v278 = vld [vmem:[#allocation2 + $0x360] sm:$0xff]
    %v279 = vld [vmem:[#allocation2 + $0x368] sm:$0xff]
    %v280 = vld [vmem:[#allocation2 + $0x370] sm:$0xff]
    %v281 = vld [vmem:[#allocation2 + $0x378] sm:$0xff]
    %v282 = vld [vmem:[#allocation2 + $0x380] sm:$0xff]
    %v283 = vld [vmem:[#allocation2 + $0x388] sm:$0xff]
    %v284 = vld [vmem:[#allocation2 + $0x390] sm:$0xff]
    %v285 = vld [vmem:[#allocation2 + $0x398] sm:$0xff]
    %v286 = vld [vmem:[#allocation2 + $0x3a0] sm:$0xff]
    %v287 = vld [vmem:[#allocation2 + $0x3a8] sm:$0xff]
    %v288 = vld [vmem:[#allocation2 + $0x3b0] sm:$0xff]
    %v289 = vld [vmem:[#allocation2 + $0x3b8] sm:$0xff]
    %v290 = vld [vmem:[#allocation2 + $0x3c0] sm:$0xff]
    %v291 = vld [vmem:[#allocation2 + $0x3c8] sm:$0xff]
    %v292 = vld [vmem:[#allocation2 + $0x3d0] sm:$0xff]
    %v293 = vld [vmem:[#allocation2 + $0x3d8] sm:$0xff]
    %v294 = vld [vmem:[#allocation2 + $0x3e0] sm:$0xff]
    %v295 = vld [vmem:[#allocation2 + $0x3e8] sm:$0xff]
    %v296 = vld [vmem:[#allocation2 + $0x3f0] sm:$0xff]
    %v297 = vld [vmem:[#allocation2 + $0x3f8] sm:$0xff]
    %v298 = vld [vmem:[#allocation2 + $0x400] sm:$0xff]
    %v299 = vld [vmem:[#allocation2 + $0x408] sm:$0xff]
    %v300 = vld [vmem:[#allocation2 + $0x410] sm:$0xff]
    %v301 = vld [vmem:[#allocation2 + $0x418] sm:$0xff]
    %v302 = vld [vmem:[#allocation2 + $0x420] sm:$0xff]
    %v303 = vld [vmem:[#allocation2 + $0x428] sm:$0xff]
    %v304 = vld [vmem:[#allocation2 + $0x430] sm:$0xff]
    %v305 = vld [vmem:[#allocation2 + $0x438] sm:$0xff]
    %v306 = vld [vmem:[#allocation2 + $0x440] sm:$0xff]
    %v307 = vld [vmem:[#allocation2 + $0x448] sm:$0xff]
    %v308 = vld [vmem:[#allocation2 + $0x450] sm:$0xff]
    %v309 = vld [vmem:[#allocation2 + $0x458] sm:$0xff]
    %v310 = vld [vmem:[#allocation2 + $0x460] sm:$0xff]
    %v311 = vld [vmem:[#allocation2 + $0x468] sm:$0xff]
    %v312 = vld [vmem:[#allocation2 + $0x470] sm:$0xff]
    %v313 = vld [vmem:[#allocation2 + $0x478] sm:$0xff]
    %v314 = vld [vmem:[#allocation2 + $0x480] sm:$0xff]
    %v315 = vld [vmem:[#allocation2 + $0x488] sm:$0xff]
    %v316 = vld [vmem:[#allocation2 + $0x490] sm:$0xff]
    %v317 = vld [vmem:[#allocation2 + $0x498] sm:$0xff]
    %v318 = vld [vmem:[#allocation2 + $0x4a0] sm:$0xff]
    %v319 = vld [vmem:[#allocation2 + $0x4a8] sm:$0xff]
    %v320 = vld [vmem:[#allocation2 + $0x4b0] sm:$0xff]
    %v321 = vld [vmem:[#allocation2 + $0x4b8] sm:$0xff]
    %v322 = vld [vmem:[#allocation2 + $0x4c0] sm:$0xff]
    %v323 = vld [vmem:[#allocation2 + $0x4c8] sm:$0xff]
    %v324 = vld [vmem:[#allocation2 + $0x4d0] sm:$0xff]
    %v325 = vld [vmem:[#allocation2 + $0x4d8] sm:$0xff]
    %v326 = vld [vmem:[#allocation2 + $0x4e0] sm:$0xff]
    %v327 = vld [vmem:[#allocation2 + $0x4e8] sm:$0xff]
    %v328 = vld [vmem:[#allocation2 + $0x4f0] sm:$0xff]
    %v329 = vld [vmem:[#allocation2 + $0x4f8] sm:$0xff]
    %v330 = vld [vmem:[#allocation2 + $0x500] sm:$0xff]
    %v331 = vld [vmem:[#allocation2 + $0x508] sm:$0xff]
    %v332 = vld [vmem:[#allocation2 + $0x510] sm:$0xff]
    %v333 = vld [vmem:[#allocation2 + $0x518] sm:$0xff]
    %v334 = vld [vmem:[#allocation2 + $0x520] sm:$0xff]
    %v335 = vld [vmem:[#allocation2 + $0x528] sm:$0xff]
    %v336 = vld [vmem:[#allocation2 + $0x530] sm:$0xff]
    %v337 = vld [vmem:[#allocation2 + $0x538] sm:$0xff]
    %v338 = vld [vmem:[#allocation2 + $0x540] sm:$0xff]
    %v339 = vld [vmem:[#allocation2 + $0x548] sm:$0xff]
    %v340 = vld [vmem:[#allocation2 + $0x550] sm:$0xff]
    %v341 = vld [vmem:[#allocation2 + $0x558] sm:$0xff]
    %v342 = vld [vmem:[#allocation2 + $0x560] sm:$0xff]
    %v343 = vld [vmem:[#allocation2 + $0x568] sm:$0xff]
    %v344 = vld [vmem:[#allocation2 + $0x570] sm:$0xff]
    %v345 = vld [vmem:[#allocation2 + $0x578] sm:$0xff]
    %v346 = vld [vmem:[#allocation2 + $0x580] sm:$0xff]
    %v347 = vld [vmem:[#allocation2 + $0x588] sm:$0xff]
    %v348 = vld [vmem:[#allocation2 + $0x590] sm:$0xff]
    %v349 = vld [vmem:[#allocation2 + $0x598] sm:$0xff]
    %v350 = vld [vmem:[#allocation2 + $0x5a0] sm:$0xff]
    %v351 = vld [vmem:[#allocation2 + $0x5a8] sm:$0xff]
    %v352 = vld [vmem:[#allocation2 + $0x5b0] sm:$0xff]
    %v353 = vld [vmem:[#allocation2 + $0x5b8] sm:$0xff]
    %v354 = vld [vmem:[#allocation2 + $0x5c0] sm:$0xff]
    %v355 = vld [vmem:[#allocation2 + $0x5c8] sm:$0xff]
    %v356 = vld [vmem:[#allocation2 + $0x5d0] sm:$0xff]
    %v357 = vld [vmem:[#allocation2 + $0x5d8] sm:$0xff]
    %v358 = vld [vmem:[#allocation2 + $0x5e0] sm:$0xff]
    %v359 = vld [vmem:[#allocation2 + $0x5e8] sm:$0xff]
    %v360 = vld [vmem:[#allocation2 + $0x5f0] sm:$0xff]
    %v361 = vld [vmem:[#allocation2 + $0x5f8] sm:$0xff]
    %v362 = vld [vmem:[#allocation2 + $0x600] sm:$0xff]
    %v363 = vld [vmem:[#allocation2 + $0x608] sm:$0xff]
    %v364 = vld [vmem:[#allocation2 + $0x610] sm:$0xff]
    %v365 = vld [vmem:[#allocation2 + $0x618] sm:$0xff]
    %v366 = vld [vmem:[%s2] sm:$0xf]
    %v368 = vlaneseq
    %v369 = vshrl.u32 %v368, 7
    %v370 = vsub.s32 0, %v369
    %v371 = vrot.slane %v366, %v370
    %v372 = vlaneseq
    %v373 = vshrl.u32 %v372, 7
    %v374 = vsub.s32 1, %v373
    %v375 = vrot.slane %v366, %v374
    %v376 = vlaneseq
    %v377 = vshrl.u32 %v376, 7
    %v378 = vsub.s32 2, %v377
    %v379 = vrot.slane %v366, %v378
    %v380 = vlaneseq
    %v381 = vshrl.u32 %v380, 7
    %v382 = vsub.s32 3, %v381
    %v383 = vrot.slane %v366, %v382
    %v584 = vunpack.c.l.b16 %v170
    %v585 = vunpack.c.h.b16 %v170
    %v586 = vunpack.c.l.b16 %v171
    %v587 = vunpack.c.h.b16 %v171
    %v588 = vunpack.c.l.b16 %v172
    %v589 = vunpack.c.h.b16 %v172
    %v590 = vunpack.c.l.b16 %v173
    %v591 = vunpack.c.h.b16 %v173
    %v592 = vunpack.c.l.b16 %v174
    %v593 = vunpack.c.h.b16 %v174
    %v594 = vunpack.c.l.b16 %v175
    %v595 = vunpack.c.h.b16 %v175
    %v596 = vunpack.c.l.b16 %v176
    %v597 = vunpack.c.h.b16 %v176
    %v598 = vunpack.c.l.b16 %v177
    %v599 = vunpack.c.h.b16 %v177
    %v600 = vunpack.c.l.b16 %v178
    %v601 = vunpack.c.h.b16 %v178
    %v602 = vunpack.c.l.b16 %v179
    %v603 = vunpack.c.h.b16 %v179
    %v604 = vunpack.c.l.b16 %v180
    %v605 = vunpack.c.h.b16 %v180
    %v606 = vunpack.c.l.b16 %v181
    %v607 = vunpack.c.h.b16 %v181
    %v608 = vunpack.c.l.b16 %v182
    %v609 = vunpack.c.h.b16 %v182
    %v610 = vunpack.c.l.b16 %v183
    %v611 = vunpack.c.h.b16 %v183
    %v612 = vunpack.c.l.b16 %v184
    %v613 = vunpack.c.h.b16 %v184
    %v614 = vunpack.c.l.b16 %v185
    %v615 = vunpack.c.h.b16 %v185
    %v616 = vunpack.c.l.b16 %v186
    %v617 = vunpack.c.h.b16 %v186
    %v618 = vunpack.c.l.b16 %v187
    %v619 = vunpack.c.h.b16 %v187
    %v620 = vunpack.c.l.b16 %v188
    %v621 = vunpack.c.h.b16 %v188
    %v622 = vunpack.c.l.b16 %v189
    %v623 = vunpack.c.h.b16 %v189
    %v624 = vunpack.c.l.b16 %v190
    %v625 = vunpack.c.h.b16 %v190
    %v626 = vunpack.c.l.b16 %v191
    %v627 = vunpack.c.h.b16 %v191
    %v628 = vunpack.c.l.b16 %v192
    %v629 = vunpack.c.h.b16 %v192
    %v630 = vunpack.c.l.b16 %v193
    %v631 = vunpack.c.h.b16 %v193
    %v632 = vunpack.c.l.b16 %v194
    %v633 = vunpack.c.h.b16 %v194
    %v634 = vunpack.c.l.b16 %v195
    %v635 = vunpack.c.h.b16 %v195
    %v636 = vunpack.c.l.b16 %v196
    %v637 = vunpack.c.h.b16 %v196
    %v638 = vunpack.c.l.b16 %v197
    %v639 = vunpack.c.h.b16 %v197
    %v640 = vunpack.c.l.b16 %v198
    %v641 = vunpack.c.h.b16 %v198
    %v642 = vunpack.c.l.b16 %v199
    %v643 = vunpack.c.h.b16 %v199
    %v644 = vunpack.c.l.b16 %v200
    %v645 = vunpack.c.h.b16 %v200
    %v646 = vunpack.c.l.b16 %v201
    %v647 = vunpack.c.h.b16 %v201
    %v648 = vunpack.c.l.b16 %v202
    %v649 = vunpack.c.h.b16 %v202
    %v650 = vunpack.c.l.b16 %v203
    %v651 = vunpack.c.h.b16 %v203
    %v652 = vunpack.c.l.b16 %v204
    %v653 = vunpack.c.h.b16 %v204
    %v654 = vunpack.c.l.b16 %v205
    %v655 = vunpack.c.h.b16 %v205
    %v656 = vunpack.c.l.b16 %v206
    %v657 = vunpack.c.h.b16 %v206
    %v658 = vunpack.c.l.b16 %v207
    %v659 = vunpack.c.h.b16 %v207
    %v660 = vunpack.c.l.b16 %v208
    %v661 = vunpack.c.h.b16 %v208
    %v662 = vunpack.c.l.b16 %v209
    %v663 = vunpack.c.h.b16 %v209
    %v664 = vunpack.c.l.b16 %v210
    %v665 = vunpack.c.h.b16 %v210
    %v666 = vunpack.c.l.b16 %v211
    %v667 = vunpack.c.h.b16 %v211
    %v668 = vunpack.c.l.b16 %v212
    %v669 = vunpack.c.h.b16 %v212
    %v670 = vunpack.c.l.b16 %v213
    %v671 = vunpack.c.h.b16 %v213
    %v672 = vunpack.c.l.b16 %v214
    %v673 = vunpack.c.h.b16 %v214
    %v674 = vunpack.c.l.b16 %v215
    %v675 = vunpack.c.h.b16 %v215
    %v676 = vunpack.c.l.b16 %v216
    %v677 = vunpack.c.h.b16 %v216
    %v678 = vunpack.c.l.b16 %v217
    %v679 = vunpack.c.h.b16 %v217
    %v680 = vunpack.c.l.b16 %v218
    %v681 = vunpack.c.h.b16 %v218
    %v682 = vunpack.c.l.b16 %v219
    %v683 = vunpack.c.h.b16 %v219
    %v684 = vunpack.c.l.b16 %v220
    %v685 = vunpack.c.h.b16 %v220
    %v686 = vunpack.c.l.b16 %v221
    %v687 = vunpack.c.h.b16 %v221
    %v688 = vunpack.c.l.b16 %v222
    %v689 = vunpack.c.h.b16 %v222
    %v690 = vunpack.c.l.b16 %v223
    %v691 = vunpack.c.h.b16 %v223
    %v692 = vunpack.c.l.b16 %v224
    %v693 = vunpack.c.h.b16 %v224
    %v694 = vunpack.c.l.b16 %v225
    %v695 = vunpack.c.h.b16 %v225
    %v696 = vunpack.c.l.b16 %v226
    %v697 = vunpack.c.h.b16 %v226
    %v698 = vunpack.c.l.b16 %v227
    %v699 = vunpack.c.h.b16 %v227
    %v700 = vunpack.c.l.b16 %v228
    %v701 = vunpack.c.h.b16 %v228
    %v702 = vunpack.c.l.b16 %v229
    %v703 = vunpack.c.h.b16 %v229
    %v704 = vunpack.c.l.b16 %v230
    %v705 = vunpack.c.h.b16 %v230
    %v706 = vunpack.c.l.b16 %v231
    %v707 = vunpack.c.h.b16 %v231
    %v708 = vunpack.c.l.b16 %v232
    %v709 = vunpack.c.h.b16 %v232
    %v710 = vunpack.c.l.b16 %v233
    %v711 = vunpack.c.h.b16 %v233
    %v712 = vunpack.c.l.b16 %v234
    %v713 = vunpack.c.h.b16 %v234
    %v714 = vunpack.c.l.b16 %v235
    %v715 = vunpack.c.h.b16 %v235
    %v716 = vunpack.c.l.b16 %v236
    %v717 = vunpack.c.h.b16 %v236
    %v718 = vunpack.c.l.b16 %v237
    %v719 = vunpack.c.h.b16 %v237
    %v720 = vunpack.c.l.b16 %v238
    %v721 = vunpack.c.h.b16 %v238
    %v722 = vunpack.c.l.b16 %v239
    %v723 = vunpack.c.h.b16 %v239
    %v724 = vunpack.c.l.b16 %v240
    %v725 = vunpack.c.h.b16 %v240
    %v726 = vunpack.c.l.b16 %v241
    %v727 = vunpack.c.h.b16 %v241
    %v728 = vunpack.c.l.b16 %v242
    %v729 = vunpack.c.h.b16 %v242
    %v730 = vunpack.c.l.b16 %v243
    %v731 = vunpack.c.h.b16 %v243
    %v732 = vunpack.c.l.b16 %v244
    %v733 = vunpack.c.h.b16 %v244
    %v734 = vunpack.c.l.b16 %v245
    %v735 = vunpack.c.h.b16 %v245
    %v736 = vunpack.c.l.b16 %v246
    %v737 = vunpack.c.h.b16 %v246
    %v738 = vunpack.c.l.b16 %v247
    %v739 = vunpack.c.h.b16 %v247
    %v740 = vunpack.c.l.b16 %v248
    %v741 = vunpack.c.h.b16 %v248
    %v742 = vunpack.c.l.b16 %v249
    %v743 = vunpack.c.h.b16 %v249
    %v744 = vunpack.c.l.b16 %v250
    %v745 = vunpack.c.h.b16 %v250
    %v746 = vunpack.c.l.b16 %v251
    %v747 = vunpack.c.h.b16 %v251
    %v748 = vunpack.c.l.b16 %v252
    %v749 = vunpack.c.h.b16 %v252
    %v750 = vunpack.c.l.b16 %v253
    %v751 = vunpack.c.h.b16 %v253
    %v752 = vunpack.c.l.b16 %v254
    %v753 = vunpack.c.h.b16 %v254
    %v754 = vunpack.c.l.b16 %v255
    %v755 = vunpack.c.h.b16 %v255
    %v756 = vunpack.c.l.b16 %v256
    %v757 = vunpack.c.h.b16 %v256
    %v758 = vunpack.c.l.b16 %v257
    %v759 = vunpack.c.h.b16 %v257
    %v760 = vunpack.c.l.b16 %v258
    %v761 = vunpack.c.h.b16 %v258
    %v762 = vunpack.c.l.b16 %v259
    %v763 = vunpack.c.h.b16 %v259
    %v764 = vunpack.c.l.b16 %v260
    %v765 = vunpack.c.h.b16 %v260
    %v766 = vunpack.c.l.b16 %v261
    %v767 = vunpack.c.h.b16 %v261
    %v768 = vunpack.c.l.b16 %v262
    %v769 = vunpack.c.h.b16 %v262
    %v770 = vunpack.c.l.b16 %v263
    %v771 = vunpack.c.h.b16 %v263
    %v772 = vunpack.c.l.b16 %v264
    %v773 = vunpack.c.h.b16 %v264
    %v774 = vunpack.c.l.b16 %v265
    %v775 = vunpack.c.h.b16 %v265
    %v776 = vunpack.c.l.b16 %v266
    %v777 = vunpack.c.h.b16 %v266
    %v778 = vunpack.c.l.b16 %v267
    %v779 = vunpack.c.h.b16 %v267
    %v780 = vunpack.c.l.b16 %v268
    %v781 = vunpack.c.h.b16 %v268
    %v782 = vunpack.c.l.b16 %v269
    %v783 = vunpack.c.h.b16 %v269
    %v784 = vunpack.c.l.b16 %v270
    %v785 = vunpack.c.h.b16 %v270
    %v786 = vunpack.c.l.b16 %v271
    %v787 = vunpack.c.h.b16 %v271
    %v788 = vunpack.c.l.b16 %v272
    %v789 = vunpack.c.h.b16 %v272
    %v790 = vunpack.c.l.b16 %v273
    %v791 = vunpack.c.h.b16 %v273
    %v792 = vunpack.c.l.b16 %v274
    %v793 = vunpack.c.h.b16 %v274
    %v794 = vunpack.c.l.b16 %v275
    %v795 = vunpack.c.h.b16 %v275
    %v796 = vunpack.c.l.b16 %v276
    %v797 = vunpack.c.h.b16 %v276
    %v798 = vunpack.c.l.b16 %v277
    %v799 = vunpack.c.h.b16 %v277
    %v800 = vunpack.c.l.b16 %v278
    %v801 = vunpack.c.h.b16 %v278
    %v802 = vunpack.c.l.b16 %v279
    %v803 = vunpack.c.h.b16 %v279
    %v804 = vunpack.c.l.b16 %v280
    %v805 = vunpack.c.h.b16 %v280
    %v806 = vunpack.c.l.b16 %v281
    %v807 = vunpack.c.h.b16 %v281
    %v808 = vunpack.c.l.b16 %v282
    %v809 = vunpack.c.h.b16 %v282
    %v810 = vunpack.c.l.b16 %v283
    %v811 = vunpack.c.h.b16 %v283
    %v812 = vunpack.c.l.b16 %v284
    %v813 = vunpack.c.h.b16 %v284
    %v814 = vunpack.c.l.b16 %v285
    %v815 = vunpack.c.h.b16 %v285
    %v816 = vunpack.c.l.b16 %v286
    %v817 = vunpack.c.h.b16 %v286
    %v818 = vunpack.c.l.b16 %v287
    %v819 = vunpack.c.h.b16 %v287
    %v820 = vunpack.c.l.b16 %v288
    %v821 = vunpack.c.h.b16 %v288
    %v822 = vunpack.c.l.b16 %v289
    %v823 = vunpack.c.h.b16 %v289
    %v824 = vunpack.c.l.b16 %v290
    %v825 = vunpack.c.h.b16 %v290
    %v826 = vunpack.c.l.b16 %v291
    %v827 = vunpack.c.h.b16 %v291
    %v828 = vunpack.c.l.b16 %v292
    %v829 = vunpack.c.h.b16 %v292
    %v830 = vunpack.c.l.b16 %v293
    %v831 = vunpack.c.h.b16 %v293
    %v832 = vunpack.c.l.b16 %v294
    %v833 = vunpack.c.h.b16 %v294
    %v834 = vunpack.c.l.b16 %v295
    %v835 = vunpack.c.h.b16 %v295
    %v836 = vunpack.c.l.b16 %v296
    %v837 = vunpack.c.h.b16 %v296
    %v838 = vunpack.c.l.b16 %v297
    %v839 = vunpack.c.h.b16 %v297
    %v840 = vunpack.c.l.b16 %v298
    %v841 = vunpack.c.h.b16 %v298
    %v842 = vunpack.c.l.b16 %v299
    %v843 = vunpack.c.h.b16 %v299
    %v844 = vunpack.c.l.b16 %v300
    %v845 = vunpack.c.h.b16 %v300
    %v846 = vunpack.c.l.b16 %v301
    %v847 = vunpack.c.h.b16 %v301
    %v848 = vunpack.c.l.b16 %v302
    %v849 = vunpack.c.h.b16 %v302
    %v850 = vunpack.c.l.b16 %v303
    %v851 = vunpack.c.h.b16 %v303
    %v852 = vunpack.c.l.b16 %v304
    %v853 = vunpack.c.h.b16 %v304
    %v854 = vunpack.c.l.b16 %v305
    %v855 = vunpack.c.h.b16 %v305
    %v856 = vunpack.c.l.b16 %v306
    %v857 = vunpack.c.h.b16 %v306
    %v858 = vunpack.c.l.b16 %v307
    %v859 = vunpack.c.h.b16 %v307
    %v860 = vunpack.c.l.b16 %v308
    %v861 = vunpack.c.h.b16 %v308
    %v862 = vunpack.c.l.b16 %v309
    %v863 = vunpack.c.h.b16 %v309
    %v864 = vunpack.c.l.b16 %v310
    %v865 = vunpack.c.h.b16 %v310
    %v866 = vunpack.c.l.b16 %v311
    %v867 = vunpack.c.h.b16 %v311
    %v868 = vunpack.c.l.b16 %v312
    %v869 = vunpack.c.h.b16 %v312
    %v870 = vunpack.c.l.b16 %v313
    %v871 = vunpack.c.h.b16 %v313
    %v872 = vunpack.c.l.b16 %v314
    %v873 = vunpack.c.h.b16 %v314
    %v874 = vunpack.c.l.b16 %v315
    %v875 = vunpack.c.h.b16 %v315
    %v876 = vunpack.c.l.b16 %v316
    %v877 = vunpack.c.h.b16 %v316
    %v878 = vunpack.c.l.b16 %v317
    %v879 = vunpack.c.h.b16 %v317
    %v880 = vunpack.c.l.b16 %v318
    %v881 = vunpack.c.h.b16 %v318
    %v882 = vunpack.c.l.b16 %v319
    %v883 = vunpack.c.h.b16 %v319
    %v884 = vunpack.c.l.b16 %v320
    %v885 = vunpack.c.h.b16 %v320
    %v886 = vunpack.c.l.b16 %v321
    %v887 = vunpack.c.h.b16 %v321
    %v888 = vunpack.c.l.b16 %v322
    %v889 = vunpack.c.h.b16 %v322
    %v890 = vunpack.c.l.b16 %v323
    %v891 = vunpack.c.h.b16 %v323
    %v892 = vunpack.c.l.b16 %v324
    %v893 = vunpack.c.h.b16 %v324
    %v894 = vunpack.c.l.b16 %v325
    %v895 = vunpack.c.h.b16 %v325
    %v896 = vunpack.c.l.b16 %v326
    %v897 = vunpack.c.h.b16 %v326
    %v898 = vunpack.c.l.b16 %v327
    %v899 = vunpack.c.h.b16 %v327
    %v900 = vunpack.c.l.b16 %v328
    %v901 = vunpack.c.h.b16 %v328
    %v902 = vunpack.c.l.b16 %v329
    %v903 = vunpack.c.h.b16 %v329
    %v904 = vunpack.c.l.b16 %v330
    %v905 = vunpack.c.h.b16 %v330
    %v906 = vunpack.c.l.b16 %v331
    %v907 = vunpack.c.h.b16 %v331
    %v908 = vunpack.c.l.b16 %v332
    %v909 = vunpack.c.h.b16 %v332
    %v910 = vunpack.c.l.b16 %v333
    %v911 = vunpack.c.h.b16 %v333
    %v912 = vunpack.c.l.b16 %v334
    %v913 = vunpack.c.h.b16 %v334
    %v914 = vunpack.c.l.b16 %v335
    %v915 = vunpack.c.h.b16 %v335
    %v916 = vunpack.c.l.b16 %v336
    %v917 = vunpack.c.h.b16 %v336
    %v918 = vunpack.c.l.b16 %v337
    %v919 = vunpack.c.h.b16 %v337
    %v920 = vunpack.c.l.b16 %v338
    %v921 = vunpack.c.h.b16 %v338
    %v922 = vunpack.c.l.b16 %v339
    %v923 = vunpack.c.h.b16 %v339
    %v924 = vunpack.c.l.b16 %v340
    %v925 = vunpack.c.h.b16 %v340
    %v926 = vunpack.c.l.b16 %v341
    %v927 = vunpack.c.h.b16 %v341
    %v928 = vunpack.c.l.b16 %v342
    %v929 = vunpack.c.h.b16 %v342
    %v930 = vunpack.c.l.b16 %v343
    %v931 = vunpack.c.h.b16 %v343
    %v932 = vunpack.c.l.b16 %v344
    %v933 = vunpack.c.h.b16 %v344
    %v934 = vunpack.c.l.b16 %v345
    %v935 = vunpack.c.h.b16 %v345
    %v936 = vunpack.c.l.b16 %v346
    %v937 = vunpack.c.h.b16 %v346
    %v938 = vunpack.c.l.b16 %v347
    %v939 = vunpack.c.h.b16 %v347
    %v940 = vunpack.c.l.b16 %v348
    %v941 = vunpack.c.h.b16 %v348
    %v942 = vunpack.c.l.b16 %v349
    %v943 = vunpack.c.h.b16 %v349
    %v944 = vunpack.c.l.b16 %v350
    %v945 = vunpack.c.h.b16 %v350
    %v946 = vunpack.c.l.b16 %v351
    %v947 = vunpack.c.h.b16 %v351
    %v948 = vunpack.c.l.b16 %v352
    %v949 = vunpack.c.h.b16 %v352
    %v950 = vunpack.c.l.b16 %v353
    %v951 = vunpack.c.h.b16 %v353
    %v952 = vunpack.c.l.b16 %v354
    %v953 = vunpack.c.h.b16 %v354
    %v954 = vunpack.c.l.b16 %v355
    %v955 = vunpack.c.h.b16 %v355
    %v956 = vunpack.c.l.b16 %v356
    %v957 = vunpack.c.h.b16 %v356
    %v958 = vunpack.c.l.b16 %v357
    %v959 = vunpack.c.h.b16 %v357
    %v960 = vunpack.c.l.b16 %v358
    %v961 = vunpack.c.h.b16 %v358
    %v962 = vunpack.c.l.b16 %v359
    %v963 = vunpack.c.h.b16 %v359
    %v964 = vunpack.c.l.b16 %v360
    %v965 = vunpack.c.h.b16 %v360
    %v966 = vunpack.c.l.b16 %v361
    %v967 = vunpack.c.h.b16 %v361
    %v968 = vunpack.c.l.b16 %v362
    %v969 = vunpack.c.h.b16 %v362
    %v970 = vunpack.c.l.b16 %v363
    %v971 = vunpack.c.h.b16 %v363
    %v972 = vunpack.c.l.b16 %v364
    %v973 = vunpack.c.h.b16 %v364
    %v974 = vunpack.c.l.b16 %v365
    %v975 = vunpack.c.h.b16 %v365
    %v976 = vpack.c.b16 %v588, %v584
    %v977 = vpack.c.b16 %v589, %v585
    %v978 = vpack.c.b16 %v590, %v586
    %v979 = vpack.c.b16 %v591, %v587
    %v980 = vpack.c.b16 %v596, %v592
    %v981 = vpack.c.b16 %v597, %v593
    %v982 = vpack.c.b16 %v598, %v594
    %v983 = vpack.c.b16 %v599, %v595
    %v984 = vpack.c.b16 %v604, %v600
    %v985 = vpack.c.b16 %v605, %v601
    %v986 = vpack.c.b16 %v606, %v602
    %v987 = vpack.c.b16 %v607, %v603
    %v988 = vpack.c.b16 %v612, %v608
    %v989 = vpack.c.b16 %v613, %v609
    %v990 = vpack.c.b16 %v614, %v610
    %v991 = vpack.c.b16 %v615, %v611
    %v992 = vpack.c.b16 %v620, %v616
    %v993 = vpack.c.b16 %v621, %v617
    %v994 = vpack.c.b16 %v622, %v618
    %v995 = vpack.c.b16 %v623, %v619
    %v996 = vpack.c.b16 %v628, %v624
    %v997 = vpack.c.b16 %v629, %v625
    %v998 = vpack.c.b16 %v630, %v626
    %v999 = vpack.c.b16 %v631, %v627
    %v1000 = vpack.c.b16 %v636, %v632
    %v1001 = vpack.c.b16 %v637, %v633
    %v1002 = vpack.c.b16 %v638, %v634
    %v1003 = vpack.c.b16 %v639, %v635
    %v1004 = vpack.c.b16 %v644, %v640
    %v1005 = vpack.c.b16 %v645, %v641
    %v1006 = vpack.c.b16 %v646, %v642
    %v1007 = vpack.c.b16 %v647, %v643
    %v1008 = vpack.c.b16 %v652, %v648
    %v1009 = vpack.c.b16 %v653, %v649
    %v1010 = vpack.c.b16 %v654, %v650
    %v1011 = vpack.c.b16 %v655, %v651
    %v1012 = vpack.c.b16 %v660, %v656
    %v1013 = vpack.c.b16 %v661, %v657
    %v1014 = vpack.c.b16 %v662, %v658
    %v1015 = vpack.c.b16 %v663, %v659
    %v1016 = vpack.c.b16 %v668, %v664
    %v1017 = vpack.c.b16 %v669, %v665
    %v1018 = vpack.c.b16 %v670, %v666
    %v1019 = vpack.c.b16 %v671, %v667
    %v1020 = vpack.c.b16 %v676, %v672
    %v1021 = vpack.c.b16 %v677, %v673
    %v1022 = vpack.c.b16 %v678, %v674
    %v1023 = vpack.c.b16 %v679, %v675
    %v1024 = vpack.c.b16 %v684, %v680
    %v1025 = vpack.c.b16 %v685, %v681
    %v1026 = vpack.c.b16 %v686, %v682
    %v1027 = vpack.c.b16 %v687, %v683
    %v1028 = vpack.c.b16 %v692, %v688
    %v1029 = vpack.c.b16 %v693, %v689
    %v1030 = vpack.c.b16 %v694, %v690
    %v1031 = vpack.c.b16 %v695, %v691
    %v1032 = vpack.c.b16 %v700, %v696
    %v1033 = vpack.c.b16 %v701, %v697
    %v1034 = vpack.c.b16 %v702, %v698
    %v1035 = vpack.c.b16 %v703, %v699
    %v1036 = vpack.c.b16 %v708, %v704
    %v1037 = vpack.c.b16 %v709, %v705
    %v1038 = vpack.c.b16 %v710, %v706
    %v1039 = vpack.c.b16 %v711, %v707
    %v1040 = vpack.c.b16 %v716, %v712
    %v1041 = vpack.c.b16 %v717, %v713
    %v1042 = vpack.c.b16 %v718, %v714
    %v1043 = vpack.c.b16 %v719, %v715
    %v1044 = vpack.c.b16 %v724, %v720
    %v1045 = vpack.c.b16 %v725, %v721
    %v1046 = vpack.c.b16 %v726, %v722
    %v1047 = vpack.c.b16 %v727, %v723
    %v1048 = vpack.c.b16 %v732, %v728
    %v1049 = vpack.c.b16 %v733, %v729
    %v1050 = vpack.c.b16 %v734, %v730
    %v1051 = vpack.c.b16 %v735, %v731
    %v1052 = vpack.c.b16 %v740, %v736
    %v1053 = vpack.c.b16 %v741, %v737
    %v1054 = vpack.c.b16 %v742, %v738
    %v1055 = vpack.c.b16 %v743, %v739
    %v1056 = vpack.c.b16 %v748, %v744
    %v1057 = vpack.c.b16 %v749, %v745
    %v1058 = vpack.c.b16 %v750, %v746
    %v1059 = vpack.c.b16 %v751, %v747
    %v1060 = vpack.c.b16 %v756, %v752
    %v1061 = vpack.c.b16 %v757, %v753
    %v1062 = vpack.c.b16 %v758, %v754
    %v1063 = vpack.c.b16 %v759, %v755
    %v1064 = vpack.c.b16 %v764, %v760
    %v1065 = vpack.c.b16 %v765, %v761
    %v1066 = vpack.c.b16 %v766, %v762
    %v1067 = vpack.c.b16 %v767, %v763
    %v1068 = vpack.c.b16 %v772, %v768
    %v1069 = vpack.c.b16 %v773, %v769
    %v1070 = vpack.c.b16 %v774, %v770
    %v1071 = vpack.c.b16 %v775, %v771
    %v1072 = vpack.c.b16 %v780, %v776
    %v1073 = vpack.c.b16 %v781, %v777
    %v1074 = vpack.c.b16 %v782, %v778
    %v1075 = vpack.c.b16 %v783, %v779
    %v1076 = vpack.c.b16 %v788, %v784
    %v1077 = vpack.c.b16 %v789, %v785
    %v1078 = vpack.c.b16 %v790, %v786
    %v1079 = vpack.c.b16 %v791, %v787
    %v1080 = vpack.c.b16 %v796, %v792
    %v1081 = vpack.c.b16 %v797, %v793
    %v1082 = vpack.c.b16 %v798, %v794
    %v1083 = vpack.c.b16 %v799, %v795
    %v1084 = vpack.c.b16 %v804, %v800
    %v1085 = vpack.c.b16 %v805, %v801
    %v1086 = vpack.c.b16 %v806, %v802
    %v1087 = vpack.c.b16 %v807, %v803
    %v1088 = vpack.c.b16 %v812, %v808
    %v1089 = vpack.c.b16 %v813, %v809
    %v1090 = vpack.c.b16 %v814, %v810
    %v1091 = vpack.c.b16 %v815, %v811
    %v1092 = vpack.c.b16 %v820, %v816
    %v1093 = vpack.c.b16 %v821, %v817
    %v1094 = vpack.c.b16 %v822, %v818
    %v1095 = vpack.c.b16 %v823, %v819
    %v1096 = vpack.c.b16 %v828, %v824
    %v1097 = vpack.c.b16 %v829, %v825
    %v1098 = vpack.c.b16 %v830, %v826
    %v1099 = vpack.c.b16 %v831, %v827
    %v1100 = vpack.c.b16 %v836, %v832
    %v1101 = vpack.c.b16 %v837, %v833
    %v1102 = vpack.c.b16 %v838, %v834
    %v1103 = vpack.c.b16 %v839, %v835
    %v1104 = vpack.c.b16 %v844, %v840
    %v1105 = vpack.c.b16 %v845, %v841
    %v1106 = vpack.c.b16 %v846, %v842
    %v1107 = vpack.c.b16 %v847, %v843
    %v1108 = vpack.c.b16 %v852, %v848
    %v1109 = vpack.c.b16 %v853, %v849
    %v1110 = vpack.c.b16 %v854, %v850
    %v1111 = vpack.c.b16 %v855, %v851
    %v1112 = vpack.c.b16 %v860, %v856
    %v1113 = vpack.c.b16 %v861, %v857
    %v1114 = vpack.c.b16 %v862, %v858
    %v1115 = vpack.c.b16 %v863, %v859
    %v1116 = vpack.c.b16 %v868, %v864
    %v1117 = vpack.c.b16 %v869, %v865
    %v1118 = vpack.c.b16 %v870, %v866
    %v1119 = vpack.c.b16 %v871, %v867
    %v1120 = vpack.c.b16 %v876, %v872
    %v1121 = vpack.c.b16 %v877, %v873
    %v1122 = vpack.c.b16 %v878, %v874
    %v1123 = vpack.c.b16 %v879, %v875
    %v1124 = vpack.c.b16 %v884, %v880
    %v1125 = vpack.c.b16 %v885, %v881
    %v1126 = vpack.c.b16 %v886, %v882
    %v1127 = vpack.c.b16 %v887, %v883
    %v1128 = vpack.c.b16 %v892, %v888
    %v1129 = vpack.c.b16 %v893, %v889
    %v1130 = vpack.c.b16 %v894, %v890
    %v1131 = vpack.c.b16 %v895, %v891
    %v1132 = vpack.c.b16 %v900, %v896
    %v1133 = vpack.c.b16 %v901, %v897
    %v1134 = vpack.c.b16 %v902, %v898
    %v1135 = vpack.c.b16 %v903, %v899
    %v1136 = vpack.c.b16 %v908, %v904
    %v1137 = vpack.c.b16 %v909, %v905
    %v1138 = vpack.c.b16 %v910, %v906
    %v1139 = vpack.c.b16 %v911, %v907
    %v1140 = vpack.c.b16 %v916, %v912
    %v1141 = vpack.c.b16 %v917, %v913
    %v1142 = vpack.c.b16 %v918, %v914
    %v1143 = vpack.c.b16 %v919, %v915
    %v1144 = vpack.c.b16 %v924, %v920
    %v1145 = vpack.c.b16 %v925, %v921
    %v1146 = vpack.c.b16 %v926, %v922
    %v1147 = vpack.c.b16 %v927, %v923
    %v1148 = vpack.c.b16 %v932, %v928
    %v1149 = vpack.c.b16 %v933, %v929
    %v1150 = vpack.c.b16 %v934, %v930
    %v1151 = vpack.c.b16 %v935, %v931
    %v1152 = vpack.c.b16 %v940, %v936
    %v1153 = vpack.c.b16 %v941, %v937
    %v1154 = vpack.c.b16 %v942, %v938
    %v1155 = vpack.c.b16 %v943, %v939
    %v1156 = vpack.c.b16 %v948, %v944
    %v1157 = vpack.c.b16 %v949, %v945
    %v1158 = vpack.c.b16 %v950, %v946
    %v1159 = vpack.c.b16 %v951, %v947
    %v1160 = vpack.c.b16 %v956, %v952
    %v1161 = vpack.c.b16 %v957, %v953
    %v1162 = vpack.c.b16 %v958, %v954
    %v1163 = vpack.c.b16 %v959, %v955
    %v1164 = vpack.c.b16 %v964, %v960
    %v1165 = vpack.c.b16 %v965, %v961
    %v1166 = vpack.c.b16 %v966, %v962
    %v1167 = vpack.c.b16 %v967, %v963
    %v1168 = vpack.c.b16 %v972, %v968
    %v1169 = vpack.c.b16 %v973, %v969
    %v1170 = vpack.c.b16 %v974, %v970
    %v1171 = vpack.c.b16 %v975, %v971
    %vm1368 = vcmask 130048
    %v1370 = vsel %vm1368, %v169, 0
    %1372 = vmatprep.subr.bf16.mxu0 %v1005
    %1373 = vmatpush1.bf16.msra.mxu0 %v1004
    %1374 = vmatprep.subr.bf16.mxu0 %v1001
    %1375 = vmatpush1.bf16.msra.mxu0 %v1000
    %1376 = vmatprep.subr.bf16.mxu0 %v997
    %1377 = vmatpush1.bf16.msra.mxu0 %v996
    %1378 = vmatprep.subr.bf16.mxu0 %v993
    %1379 = vmatpush1.bf16.msra.mxu0 %v992
    %1380 = vmatprep.subr.bf16.mxu0 %v989
    %1381 = vmatpush1.bf16.msra.mxu0 %v988
    %1382 = vmatprep.subr.bf16.mxu0 %v985
    %1383 = vmatpush1.bf16.msra.mxu0 %v984
    %1384 = vmatprep.subr.bf16.mxu0 %v981
    %1385 = vmatpush1.bf16.msra.mxu0 %v980
    %1386 = vmatprep.subr.bf16.mxu0 %v977
    %1387 = vmatpush1.bf16.msra.mxu0 %v976
    %1388 = vmatprep.subr.bf16.mxu0 %v1037
    %1389 = vmatpush2.bf16.msra.mxu0 %v1036
    %1390 = vmatprep.subr.bf16.mxu0 %v1033
    %1391 = vmatpush2.bf16.msra.mxu0 %v1032
    %1392 = vmatprep.subr.bf16.mxu0 %v1029
    %1393 = vmatpush2.bf16.msra.mxu0 %v1028
    %1394 = vmatprep.subr.bf16.mxu0 %v1025
    %1395 = vmatpush2.bf16.msra.mxu0 %v1024
    %1396 = vmatprep.subr.bf16.mxu0 %v1021
    %1397 = vmatpush2.bf16.msra.mxu0 %v1020
    %1398 = vmatprep.subr.bf16.mxu0 %v1017
    %1399 = vmatpush2.bf16.msra.mxu0 %v1016
    %1400 = vmatprep.subr.bf16.mxu0 %v1013
    %1401 = vmatpush2.bf16.msra.mxu0 %v1012
    %1402 = vmatprep.subr.bf16.mxu0 %v1009
    %1403 = vmatpush2.bf16.msra.mxu0 %v1008
    %1404 = vmatprep.mubr.bf16.mxu0 %v164
    %1405 = vmatmul.mubr.bf16.gmra.mxu0 %v163
    %v1406 = vpop.f32.mrf.mxu0
    %v1407 = vadd.f32 %v371, %v1406
    %v1408 = vpop.f32.mrf.mxu0
    %v1409 = vadd.f32 %v375, %v1408
    %v1410 = vpop.f32.mrf.mxu0
    %v1411 = vpop.f32.mrf.mxu0
    %1412 = vdwg.mxu0
    %1413 = vmatprep.subr.bf16.mxu0 %v1069
    %1414 = vmatpush1.bf16.msra.mxu0 %v1068
    %1415 = vmatprep.subr.bf16.mxu0 %v1065
    %1416 = vmatpush1.bf16.msra.mxu0 %v1064
    %1417 = vmatprep.subr.bf16.mxu0 %v1061
    %1418 = vmatpush1.bf16.msra.mxu0 %v1060
    %1419 = vmatprep.subr.bf16.mxu0 %v1057
    %1420 = vmatpush1.bf16.msra.mxu0 %v1056
    %1421 = vmatprep.subr.bf16.mxu0 %v1053
    %1422 = vmatpush1.bf16.msra.mxu0 %v1052
    %1423 = vmatprep.subr.bf16.mxu0 %v1049
    %1424 = vmatpush1.bf16.msra.mxu0 %v1048
    %1425 = vmatprep.subr.bf16.mxu0 %v1045
    %1426 = vmatpush1.bf16.msra.mxu0 %v1044
    %1427 = vmatprep.subr.bf16.mxu0 %v1041
    %1428 = vmatpush1.bf16.msra.mxu0 %v1040
    %1429 = vmatprep.subr.bf16.mxu0 %v1101
    %1430 = vmatpush2.bf16.msra.mxu0 %v1100
    %1431 = vmatprep.subr.bf16.mxu0 %v1097
    %1432 = vmatpush2.bf16.msra.mxu0 %v1096
    %1433 = vmatprep.subr.bf16.mxu0 %v1093
    %1434 = vmatpush2.bf16.msra.mxu0 %v1092
    %1435 = vmatprep.subr.bf16.mxu0 %v1089
    %1436 = vmatpush2.bf16.msra.mxu0 %v1088
    %1437 = vmatprep.subr.bf16.mxu0 %v1085
    %1438 = vmatpush2.bf16.msra.mxu0 %v1084
    %1439 = vmatprep.subr.bf16.mxu0 %v1081
    %1440 = vmatpush2.bf16.msra.mxu0 %v1080
    %1441 = vmatprep.subr.bf16.mxu0 %v1077
    %1442 = vmatpush2.bf16.msra.mxu0 %v1076
    %1443 = vmatprep.subr.bf16.mxu0 %v1073
    %1444 = vmatpush2.bf16.msra.mxu0 %v1072
    %1445 = vmatprep.mubr.bf16.mxu0 %v166
    %1446 = vmatmul.mubr.bf16.gmra.mxu0 %v165
    %v1447 = vpop.f32.mrf.mxu0
    %v1448 = vadd.f32 %v1407, %v1447
    %v1449 = vpop.f32.mrf.mxu0
    %v1450 = vadd.f32 %v1409, %v1449
    %v1451 = vpop.f32.mrf.mxu0
    %v1452 = vpop.f32.mrf.mxu0
    %1453 = vdwg.mxu0
    %1454 = vmatprep.subr.bf16.mxu0 %v1133
    %1455 = vmatpush1.bf16.msra.mxu0 %v1132
    %1456 = vmatprep.subr.bf16.mxu0 %v1129
    %1457 = vmatpush1.bf16.msra.mxu0 %v1128
    %1458 = vmatprep.subr.bf16.mxu0 %v1125
    %1459 = vmatpush1.bf16.msra.mxu0 %v1124
    %1460 = vmatprep.subr.bf16.mxu0 %v1121
    %1461 = vmatpush1.bf16.msra.mxu0 %v1120
    %1462 = vmatprep.subr.bf16.mxu0 %v1117
    %1463 = vmatpush1.bf16.msra.mxu0 %v1116
    %1464 = vmatprep.subr.bf16.mxu0 %v1113
    %1465 = vmatpush1.bf16.msra.mxu0 %v1112
    %1466 = vmatprep.subr.bf16.mxu0 %v1109
    %1467 = vmatpush1.bf16.msra.mxu0 %v1108
    %1468 = vmatprep.subr.bf16.mxu0 %v1105
    %1469 = vmatpush1.bf16.msra.mxu0 %v1104
    %1470 = vmatprep.subr.bf16.mxu0 %v1165
    %1471 = vmatpush2.bf16.msra.mxu0 %v1164
    %1472 = vmatprep.subr.bf16.mxu0 %v1161
    %1473 = vmatpush2.bf16.msra.mxu0 %v1160
    %1474 = vmatprep.subr.bf16.mxu0 %v1157
    %1475 = vmatpush2.bf16.msra.mxu0 %v1156
    %1476 = vmatprep.subr.bf16.mxu0 %v1153
    %1477 = vmatpush2.bf16.msra.mxu0 %v1152
    %1478 = vmatprep.subr.bf16.mxu0 %v1149
    %1479 = vmatpush2.bf16.msra.mxu0 %v1148
    %1480 = vmatprep.subr.bf16.mxu0 %v1145
    %1481 = vmatpush2.bf16.msra.mxu0 %v1144
    %1482 = vmatprep.subr.bf16.mxu0 %v1141
    %1483 = vmatpush2.bf16.msra.mxu0 %v1140
    %1484 = vmatprep.subr.bf16.mxu0 %v1137
    %1485 = vmatpush2.bf16.msra.mxu0 %v1136
    %1486 = vmatprep.mubr.bf16.mxu0 %v168
    %1487 = vmatmul.mubr.bf16.gmra.mxu0 %v167
    %v1488 = vpop.f32.mrf.mxu0
    %v1489 = vadd.f32 %v1448, %v1488
    %v1490 = vpop.f32.mrf.mxu0
    %v1491 = vadd.f32 %v1450, %v1490
    %v1492 = vpop.f32.mrf.mxu0
    %v1493 = vpop.f32.mrf.mxu0
    %1494 = vdwg.mxu0
    %1495 = vmatprep.subr.bf16.mxu0 0
    %1496 = vmatpush1.bf16.msra.mxu0 0
    %1497 = vmatprep.subr.bf16.mxu0 0
    %1498 = vmatpush1.bf16.msra.mxu0 0
    %1499 = vmatprep.subr.bf16.mxu0 0
    %1500 = vmatpush1.bf16.msra.mxu0 0
    %1501 = vmatprep.subr.bf16.mxu0 0
    %1502 = vmatpush1.bf16.msra.mxu0 0
    %1503 = vmatprep.subr.bf16.mxu0 0
    %1504 = vmatpush1.bf16.msra.mxu0 0
    %1505 = vmatprep.subr.bf16.mxu0 0
    %1506 = vmatpush1.bf16.msra.mxu0 0
    %1507 = vmatprep.subr.bf16.mxu0 0
    %1508 = vmatpush1.bf16.msra.mxu0 0
    %1509 = vmatprep.subr.bf16.mxu0 %v1169
    %1510 = vmatpush1.bf16.msra.mxu0 %v1168
    %1511 = vmatprep.subr.bf16.mxu0 0
    %1512 = vmatpush2.bf16.msra.mxu0 0
    %1513 = vmatprep.subr.bf16.mxu0 0
    %1514 = vmatpush2.bf16.msra.mxu0 0
    %1515 = vmatprep.subr.bf16.mxu0 0
    %1516 = vmatpush2.bf16.msra.mxu0 0
    %1517 = vmatprep.subr.bf16.mxu0 0
    %1518 = vmatpush2.bf16.msra.mxu0 0
    %1519 = vmatprep.subr.bf16.mxu0 0
    %1520 = vmatpush2.bf16.msra.mxu0 0
    %1521 = vmatprep.subr.bf16.mxu0 0
    %1522 = vmatpush2.bf16.msra.mxu0 0
    %1523 = vmatprep.subr.bf16.mxu0 0
    %1524 = vmatpush2.bf16.msra.mxu0 0
    %1525 = vmatprep.subr.bf16.mxu0 0
    %1526 = vmatpush2.bf16.msra.mxu0 0
    %1527 = vmatprep.mubr.bf16.mxu0 0
    %1528 = vmatmul.mubr.bf16.gmra.mxu0 %v1370
    %v1529 = vpop.f32.mrf.mxu0
    %v1530 = vadd.f32 %v1489, %v1529
    %v1531 = vpop.f32.mrf.mxu0
    %v1532 = vadd.f32 %v1491, %v1531
    %v1533 = vpop.f32.mrf.mxu0
    %v1534 = vpop.f32.mrf.mxu0
    %1535 = vdwg.mxu0
    %1536 = vmatprep.subr.bf16.mxu0 %v1007
    %1537 = vmatpush1.bf16.msra.mxu0 %v1006
    %1538 = vmatprep.subr.bf16.mxu0 %v1003
    %1539 = vmatpush1.bf16.msra.mxu0 %v1002
    %1540 = vmatprep.subr.bf16.mxu0 %v999
    %1541 = vmatpush1.bf16.msra.mxu0 %v998
    %1542 = vmatprep.subr.bf16.mxu0 %v995
    %1543 = vmatpush1.bf16.msra.mxu0 %v994
    %1544 = vmatprep.subr.bf16.mxu0 %v991
    %1545 = vmatpush1.bf16.msra.mxu0 %v990
    %1546 = vmatprep.subr.bf16.mxu0 %v987
    %1547 = vmatpush1.bf16.msra.mxu0 %v986
    %1548 = vmatprep.subr.bf16.mxu0 %v983
    %1549 = vmatpush1.bf16.msra.mxu0 %v982
    %1550 = vmatprep.subr.bf16.mxu0 %v979
    %1551 = vmatpush1.bf16.msra.mxu0 %v978
    %1552 = vmatprep.subr.bf16.mxu0 %v1039
    %1553 = vmatpush2.bf16.msra.mxu0 %v1038
    %1554 = vmatprep.subr.bf16.mxu0 %v1035
    %1555 = vmatpush2.bf16.msra.mxu0 %v1034
    %1556 = vmatprep.subr.bf16.mxu0 %v1031
    %1557 = vmatpush2.bf16.msra.mxu0 %v1030
    %1558 = vmatprep.subr.bf16.mxu0 %v1027
    %1559 = vmatpush2.bf16.msra.mxu0 %v1026
    %1560 = vmatprep.subr.bf16.mxu0 %v1023
    %1561 = vmatpush2.bf16.msra.mxu0 %v1022
    %1562 = vmatprep.subr.bf16.mxu0 %v1019
    %1563 = vmatpush2.bf16.msra.mxu0 %v1018
    %1564 = vmatprep.subr.bf16.mxu0 %v1015
    %1565 = vmatpush2.bf16.msra.mxu0 %v1014
    %1566 = vmatprep.subr.bf16.mxu0 %v1011
    %1567 = vmatpush2.bf16.msra.mxu0 %v1010
    %1568 = vmatprep.mubr.bf16.mxu0 %v164
    %1569 = vmatmul.mubr.bf16.gmra.mxu0 %v163
    %v1570 = vpop.f32.mrf.mxu0
    %v1571 = vadd.f32 %v379, %v1570
    %v1572 = vpop.f32.mrf.mxu0
    %v1573 = vadd.f32 %v383, %v1572
    %v1574 = vpop.f32.mrf.mxu0
    %v1575 = vpop.f32.mrf.mxu0
    %1576 = vdwg.mxu0
    %1577 = vmatprep.subr.bf16.mxu0 %v1071
    %1578 = vmatpush1.bf16.msra.mxu0 %v1070
    %1579 = vmatprep.subr.bf16.mxu0 %v1067
    %1580 = vmatpush1.bf16.msra.mxu0 %v1066
    %1581 = vmatprep.subr.bf16.mxu0 %v1063
    %1582 = vmatpush1.bf16.msra.mxu0 %v1062
    %1583 = vmatprep.subr.bf16.mxu0 %v1059
    %1584 = vmatpush1.bf16.msra.mxu0 %v1058
    %1585 = vmatprep.subr.bf16.mxu0 %v1055
    %1586 = vmatpush1.bf16.msra.mxu0 %v1054
    %1587 = vmatprep.subr.bf16.mxu0 %v1051
    %1588 = vmatpush1.bf16.msra.mxu0 %v1050
    %1589 = vmatprep.subr.bf16.mxu0 %v1047
    %1590 = vmatpush1.bf16.msra.mxu0 %v1046
    %1591 = vmatprep.subr.bf16.mxu0 %v1043
    %1592 = vmatpush1.bf16.msra.mxu0 %v1042
    %1593 = vmatprep.subr.bf16.mxu0 %v1103
    %1594 = vmatpush2.bf16.msra.mxu0 %v1102
    %1595 = vmatprep.subr.bf16.mxu0 %v1099
    %1596 = vmatpush2.bf16.msra.mxu0 %v1098
    %1597 = vmatprep.subr.bf16.mxu0 %v1095
    %1598 = vmatpush2.bf16.msra.mxu0 %v1094
    %1599 = vmatprep.subr.bf16.mxu0 %v1091
    %1600 = vmatpush2.bf16.msra.mxu0 %v1090
    %1601 = vmatprep.subr.bf16.mxu0 %v1087
    %1602 = vmatpush2.bf16.msra.mxu0 %v1086
    %1603 = vmatprep.subr.bf16.mxu0 %v1083
    %1604 = vmatpush2.bf16.msra.mxu0 %v1082
    %1605 = vmatprep.subr.bf16.mxu0 %v1079
    %1606 = vmatpush2.bf16.msra.mxu0 %v1078
    %1607 = vmatprep.subr.bf16.mxu0 %v1075
    %1608 = vmatpush2.bf16.msra.mxu0 %v1074
    %1609 = vmatprep.mubr.bf16.mxu0 %v166
    %1610 = vmatmul.mubr.bf16.gmra.mxu0 %v165
    %v1611 = vpop.f32.mrf.mxu0
    %v1612 = vadd.f32 %v1571, %v1611
    %v1613 = vpop.f32.mrf.mxu0
    %v1614 = vadd.f32 %v1573, %v1613
    %v1615 = vpop.f32.mrf.mxu0
    %v1616 = vpop.f32.mrf.mxu0
    %1617 = vdwg.mxu0
    %1618 = vmatprep.subr.bf16.mxu0 %v1135
    %1619 = vmatpush1.bf16.msra.mxu0 %v1134
    %1620 = vmatprep.subr.bf16.mxu0 %v1131
    %1621 = vmatpush1.bf16.msra.mxu0 %v1130
    %1622 = vmatprep.subr.bf16.mxu0 %v1127
    %1623 = vmatpush1.bf16.msra.mxu0 %v1126
    %1624 = vmatprep.subr.bf16.mxu0 %v1123
    %1625 = vmatpush1.bf16.msra.mxu0 %v1122
    %1626 = vmatprep.subr.bf16.mxu0 %v1119
    %1627 = vmatpush1.bf16.msra.mxu0 %v1118
    %1628 = vmatprep.subr.bf16.mxu0 %v1115
    %1629 = vmatpush1.bf16.msra.mxu0 %v1114
    %1630 = vmatprep.subr.bf16.mxu0 %v1111
    %1631 = vmatpush1.bf16.msra.mxu0 %v1110
    %1632 = vmatprep.subr.bf16.mxu0 %v1107
    %1633 = vmatpush1.bf16.msra.mxu0 %v1106
    %1634 = vmatprep.subr.bf16.mxu0 %v1167
    %1635 = vmatpush2.bf16.msra.mxu0 %v1166
    %1636 = vmatprep.subr.bf16.mxu0 %v1163
    %1637 = vmatpush2.bf16.msra.mxu0 %v1162
    %1638 = vmatprep.subr.bf16.mxu0 %v1159
    %1639 = vmatpush2.bf16.msra.mxu0 %v1158
    %1640 = vmatprep.subr.bf16.mxu0 %v1155
    %1641 = vmatpush2.bf16.msra.mxu0 %v1154
    %1642 = vmatprep.subr.bf16.mxu0 %v1151
    %1643 = vmatpush2.bf16.msra.mxu0 %v1150
    %1644 = vmatprep.subr.bf16.mxu0 %v1147
    %1645 = vmatpush2.bf16.msra.mxu0 %v1146
    %1646 = vmatprep.subr.bf16.mxu0 %v1143
    %1647 = vmatpush2.bf16.msra.mxu0 %v1142
    %1648 = vmatprep.subr.bf16.mxu0 %v1139
    %1649 = vmatpush2.bf16.msra.mxu0 %v1138
    %1650 = vmatprep.mubr.bf16.mxu0 %v168
    %1651 = vmatmul.mubr.bf16.gmra.mxu0 %v167
    %v1652 = vpop.f32.mrf.mxu0
    %v1653 = vadd.f32 %v1612, %v1652
    %v1654 = vpop.f32.mrf.mxu0
    %v1655 = vadd.f32 %v1614, %v1654
    %v1656 = vpop.f32.mrf.mxu0
    %v1657 = vpop.f32.mrf.mxu0
    %1658 = vdwg.mxu0
    %1659 = vmatprep.subr.bf16.mxu0 0
    %1660 = vmatpush1.bf16.msra.mxu0 0
    %1661 = vmatprep.subr.bf16.mxu0 0
    %1662 = vmatpush1.bf16.msra.mxu0 0
    %1663 = vmatprep.subr.bf16.mxu0 0
    %1664 = vmatpush1.bf16.msra.mxu0 0
    %1665 = vmatprep.subr.bf16.mxu0 0
    %1666 = vmatpush1.bf16.msra.mxu0 0
    %1667 = vmatprep.subr.bf16.mxu0 0
    %1668 = vmatpush1.bf16.msra.mxu0 0
    %1669 = vmatprep.subr.bf16.mxu0 0
    %1670 = vmatpush1.bf16.msra.mxu0 0
    %1671 = vmatprep.subr.bf16.mxu0 0
    %1672 = vmatpush1.bf16.msra.mxu0 0
    %1673 = vmatprep.subr.bf16.mxu0 %v1171
    %1674 = vmatpush1.bf16.msra.mxu0 %v1170
    %1675 = vmatprep.subr.bf16.mxu0 0
    %1676 = vmatpush2.bf16.msra.mxu0 0
    %1677 = vmatprep.subr.bf16.mxu0 0
    %1678 = vmatpush2.bf16.msra.mxu0 0
    %1679 = vmatprep.subr.bf16.mxu0 0
    %1680 = vmatpush2.bf16.msra.mxu0 0
    %1681 = vmatprep.subr.bf16.mxu0 0
    %1682 = vmatpush2.bf16.msra.mxu0 0
    %1683 = vmatprep.subr.bf16.mxu0 0
    %1684 = vmatpush2.bf16.msra.mxu0 0
    %1685 = vmatprep.subr.bf16.mxu0 0
    %1686 = vmatpush2.bf16.msra.mxu0 0
    %1687 = vmatprep.subr.bf16.mxu0 0
    %1688 = vmatpush2.bf16.msra.mxu0 0
    %1689 = vmatprep.subr.bf16.mxu0 0
    %1690 = vmatpush2.bf16.msra.mxu0 0
    %1691 = vmatprep.mubr.bf16.mxu0 0
    %1692 = vmatmul.mubr.bf16.gmra.mxu0 %v1370
    %v1693 = vpop.f32.mrf.mxu0
    %v1694 = vadd.f32 %v1653, %v1693
    %v1695 = vpop.f32.mrf.mxu0
    %v1696 = vadd.f32 %v1655, %v1695
    %v1697 = vpop.f32.mrf.mxu0
    %v1698 = vpop.f32.mrf.mxu0
    %1699 = vdwg.mxu0
    %v1700 = vmax.f32 %v1530, 0.0
    %v1701 = vmax.f32 %v1532, 0.0
    %v1702 = vmax.f32 %v1694, 0.0
    %v1703 = vmax.f32 %v1696, 0.0
    %v1704 = vpack.c.bf16 %v1700, %v1700
    %v1705 = vpack.c.bf16 %v1701, %v1701
    %v1706 = vpack.c.bf16 %v1702, %v1702
    %v1707 = vpack.c.bf16 %v1703, %v1703
    %v1708 = vld [vmem:[#allocation5] sm:$0xff]
    %v1709 = vld [vmem:[#allocation5 + $0x8] sm:$0xff]
    %v1710 = vld [vmem:[#allocation5 + $0x10] sm:$0xff]
    %v1711 = vld [vmem:[#allocation5 + $0x18] sm:$0xff]
    %v1712 = vld [vmem:[#allocation5 + $0x20] sm:$0xff]
    %v1713 = vld [vmem:[#allocation5 + $0x28] sm:$0xff]
    %v1714 = vld [vmem:[#allocation5 + $0x30] sm:$0xff]
    %v1715 = vld [vmem:[#allocation5 + $0x38] sm:$0xff]
    %v1716 = vld [vmem:[#allocation5 + $0x40] sm:$0xff]
    %v1717 = vld [vmem:[#allocation5 + $0x48] sm:$0xff]
    %v1718 = vld [vmem:[#allocation5 + $0x50] sm:$0xff]
    %v1719 = vld [vmem:[#allocation5 + $0x58] sm:$0xff]
    %v1720 = vld [vmem:[#allocation5 + $0x60] sm:$0xff]
    %v1721 = vld [vmem:[#allocation5 + $0x68] sm:$0xff]
    %v1722 = vld [vmem:[#allocation5 + $0x70] sm:$0xff]
    %v1723 = vld [vmem:[#allocation5 + $0x78] sm:$0xff]
    %v1724 = vld [vmem:[#allocation5 + $0x80] sm:$0xff]
    %v1725 = vld [vmem:[#allocation5 + $0x88] sm:$0xff]
    %v1726 = vld [vmem:[#allocation5 + $0x90] sm:$0xff]
    %v1727 = vld [vmem:[#allocation5 + $0x98] sm:$0xff]
    %v1728 = vld [vmem:[#allocation5 + $0xa0] sm:$0xff]
    %v1729 = vld [vmem:[#allocation5 + $0xa8] sm:$0xff]
    %v1730 = vld [vmem:[#allocation5 + $0xb0] sm:$0xff]
    %v1731 = vld [vmem:[#allocation5 + $0xb8] sm:$0xff]
    %v1732 = vld [vmem:[#allocation5 + $0xc0] sm:$0xff]
    %v1733 = vld [vmem:[#allocation5 + $0xc8] sm:$0xff]
    %v1734 = vld [vmem:[#allocation5 + $0xd0] sm:$0xff]
    %v1735 = vld [vmem:[#allocation5 + $0xd8] sm:$0xff]
    %v1736 = vld [vmem:[#allocation5 + $0xe0] sm:$0xff]
    %v1737 = vld [vmem:[#allocation5 + $0xe8] sm:$0xff]
    %v1738 = vld [vmem:[#allocation5 + $0xf0] sm:$0xff]
    %v1739 = vld [vmem:[#allocation5 + $0xf8] sm:$0xff]
    %v1740 = vld [vmem:[#allocation5 + $0x100] sm:$0xff]
    %v1741 = vld [vmem:[#allocation5 + $0x108] sm:$0xff]
    %v1742 = vld [vmem:[#allocation5 + $0x110] sm:$0xff]
    %v1743 = vld [vmem:[#allocation5 + $0x118] sm:$0xff]
    %v1744 = vld [vmem:[#allocation5 + $0x120] sm:$0xff]
    %v1745 = vld [vmem:[#allocation5 + $0x128] sm:$0xff]
    %v1746 = vld [vmem:[#allocation5 + $0x130] sm:$0xff]
    %v1747 = vld [vmem:[#allocation5 + $0x138] sm:$0xff]
    %v1748 = vld [vmem:[#allocation5 + $0x140] sm:$0xff]
    %v1749 = vld [vmem:[#allocation5 + $0x148] sm:$0xff]
    %v1750 = vld [vmem:[#allocation5 + $0x150] sm:$0xff]
    %v1751 = vld [vmem:[#allocation5 + $0x158] sm:$0xff]
    %v1752 = vld [vmem:[#allocation5 + $0x160] sm:$0xff]
    %v1753 = vld [vmem:[#allocation5 + $0x168] sm:$0xff]
    %v1754 = vld [vmem:[#allocation5 + $0x170] sm:$0xff]
    %v1755 = vld [vmem:[#allocation5 + $0x178] sm:$0xff]
    %v1756 = vld [vmem:[#allocation5 + $0x180] sm:$0xff]
    %v1757 = vld [vmem:[#allocation5 + $0x188] sm:$0xff]
    %v1758 = vld [vmem:[#allocation5 + $0x190] sm:$0xff]
    %v1759 = vld [vmem:[#allocation5 + $0x198] sm:$0xff]
    %v1760 = vld [vmem:[#allocation5 + $0x1a0] sm:$0xff]
    %v1761 = vld [vmem:[#allocation5 + $0x1a8] sm:$0xff]
    %v1762 = vld [vmem:[#allocation5 + $0x1b0] sm:$0xff]
    %v1763 = vld [vmem:[#allocation5 + $0x1b8] sm:$0xff]
    %v1764 = vld [vmem:[#allocation5 + $0x1c0] sm:$0xff]
    %v1765 = vld [vmem:[#allocation5 + $0x1c8] sm:$0xff]
    %v1766 = vld [vmem:[#allocation5 + $0x1d0] sm:$0xff]
    %v1767 = vld [vmem:[#allocation5 + $0x1d8] sm:$0xff]
    %v1768 = vld [vmem:[#allocation5 + $0x1e0] sm:$0xff]
    %v1769 = vld [vmem:[#allocation5 + $0x1e8] sm:$0xff]
    %v1770 = vld [vmem:[#allocation5 + $0x1f0] sm:$0xff]
    %v1771 = vld [vmem:[#allocation5 + $0x1f8] sm:$0xff]
    %v1772 = vld [vmem:[#allocation5 + $0x200] sm:$0xff]
    %v1773 = vld [vmem:[#allocation5 + $0x208] sm:$0xff]
    %v1774 = vld [vmem:[#allocation5 + $0x210] sm:$0xff]
    %v1775 = vld [vmem:[#allocation5 + $0x218] sm:$0xff]
    %v1776 = vld [vmem:[#allocation5 + $0x220] sm:$0xff]
    %v1777 = vld [vmem:[#allocation5 + $0x228] sm:$0xff]
    %v1778 = vld [vmem:[#allocation5 + $0x230] sm:$0xff]
    %v1779 = vld [vmem:[#allocation5 + $0x238] sm:$0xff]
    %v1780 = vld [vmem:[#allocation5 + $0x240] sm:$0xff]
    %v1781 = vld [vmem:[#allocation5 + $0x248] sm:$0xff]
    %v1782 = vld [vmem:[#allocation5 + $0x250] sm:$0xff]
    %v1783 = vld [vmem:[#allocation5 + $0x258] sm:$0xff]
    %v1784 = vld [vmem:[#allocation5 + $0x260] sm:$0xff]
    %v1785 = vld [vmem:[#allocation5 + $0x268] sm:$0xff]
    %v1786 = vld [vmem:[#allocation5 + $0x270] sm:$0xff]
    %v1787 = vld [vmem:[#allocation5 + $0x278] sm:$0xff]
    %v1788 = vld [vmem:[#allocation5 + $0x280] sm:$0xff]
    %v1789 = vld [vmem:[#allocation5 + $0x288] sm:$0xff]
    %v1790 = vld [vmem:[#allocation5 + $0x290] sm:$0xff]
    %v1791 = vld [vmem:[#allocation5 + $0x298] sm:$0xff]
    %v1792 = vld [vmem:[#allocation5 + $0x2a0] sm:$0xff]
    %v1793 = vld [vmem:[#allocation5 + $0x2a8] sm:$0xff]
    %v1794 = vld [vmem:[#allocation5 + $0x2b0] sm:$0xff]
    %v1795 = vld [vmem:[#allocation5 + $0x2b8] sm:$0xff]
    %v1796 = vld [vmem:[#allocation5 + $0x2c0] sm:$0xff]
    %v1797 = vld [vmem:[#allocation5 + $0x2c8] sm:$0xff]
    %v1798 = vld [vmem:[#allocation5 + $0x2d0] sm:$0xff]
    %v1799 = vld [vmem:[#allocation5 + $0x2d8] sm:$0xff]
    %v1800 = vld [vmem:[#allocation5 + $0x2e0] sm:$0xff]
    %v1801 = vld [vmem:[#allocation5 + $0x2e8] sm:$0xff]
    %v1802 = vld [vmem:[#allocation5 + $0x2f0] sm:$0xff]
    %v1803 = vld [vmem:[#allocation5 + $0x2f8] sm:$0xff]
    %v1804 = vld [vmem:[#allocation5 + $0x300] sm:$0xff]
    %v1805 = vld [vmem:[#allocation5 + $0x308] sm:$0xff]
    %v1806 = vld [vmem:[#allocation5 + $0x310] sm:$0xff]
    %v1807 = vld [vmem:[#allocation5 + $0x318] sm:$0xff]
    %v1808 = vld [vmem:[#allocation5 + $0x320] sm:$0xff]
    %v1809 = vld [vmem:[#allocation5 + $0x328] sm:$0xff]
    %v1810 = vld [vmem:[#allocation5 + $0x330] sm:$0xff]
    %v1811 = vld [vmem:[#allocation5 + $0x338] sm:$0xff]
    %v1812 = vld [vmem:[#allocation5 + $0x340] sm:$0xff]
    %v1813 = vld [vmem:[#allocation5 + $0x348] sm:$0xff]
    %v1814 = vld [vmem:[#allocation5 + $0x350] sm:$0xff]
    %v1815 = vld [vmem:[#allocation5 + $0x358] sm:$0xff]
    %v1816 = vld [vmem:[#allocation5 + $0x360] sm:$0xff]
    %v1817 = vld [vmem:[#allocation5 + $0x368] sm:$0xff]
    %v1818 = vld [vmem:[#allocation5 + $0x370] sm:$0xff]
    %v1819 = vld [vmem:[#allocation5 + $0x378] sm:$0xff]
    %v1820 = vld [vmem:[#allocation5 + $0x380] sm:$0xff]
    %v1821 = vld [vmem:[#allocation5 + $0x388] sm:$0xff]
    %v1822 = vld [vmem:[#allocation5 + $0x390] sm:$0xff]
    %v1823 = vld [vmem:[#allocation5 + $0x398] sm:$0xff]
    %v1824 = vld [vmem:[#allocation5 + $0x3a0] sm:$0xff]
    %v1825 = vld [vmem:[#allocation5 + $0x3a8] sm:$0xff]
    %v1826 = vld [vmem:[#allocation5 + $0x3b0] sm:$0xff]
    %v1827 = vld [vmem:[#allocation5 + $0x3b8] sm:$0xff]
    %v1828 = vld [vmem:[#allocation5 + $0x3c0] sm:$0xff]
    %v1829 = vld [vmem:[#allocation5 + $0x3c8] sm:$0xff]
    %v1830 = vld [vmem:[#allocation5 + $0x3d0] sm:$0xff]
    %v1831 = vld [vmem:[#allocation5 + $0x3d8] sm:$0xff]
    %v1832 = vld [vmem:[#allocation5 + $0x3e0] sm:$0xff]
    %v1833 = vld [vmem:[#allocation5 + $0x3e8] sm:$0xff]
    %v1834 = vld [vmem:[#allocation5 + $0x3f0] sm:$0xff]
    %v1835 = vld [vmem:[#allocation5 + $0x3f8] sm:$0xff]
    %v1836 = vld [vmem:[#allocation5 + $0x400] sm:$0xff]
    %v1837 = vld [vmem:[#allocation5 + $0x408] sm:$0xff]
    %v1838 = vld [vmem:[#allocation5 + $0x410] sm:$0xff]
    %v1839 = vld [vmem:[#allocation5 + $0x418] sm:$0xff]
    %v1840 = vld [vmem:[#allocation5 + $0x420] sm:$0xff]
    %v1841 = vld [vmem:[#allocation5 + $0x428] sm:$0xff]
    %v1842 = vld [vmem:[#allocation5 + $0x430] sm:$0xff]
    %v1843 = vld [vmem:[#allocation5 + $0x438] sm:$0xff]
    %v1844 = vld [vmem:[#allocation5 + $0x440] sm:$0xff]
    %v1845 = vld [vmem:[#allocation5 + $0x448] sm:$0xff]
    %v1846 = vld [vmem:[#allocation5 + $0x450] sm:$0xff]
    %v1847 = vld [vmem:[#allocation5 + $0x458] sm:$0xff]
    %v1848 = vld [vmem:[#allocation5 + $0x460] sm:$0xff]
    %v1849 = vld [vmem:[#allocation5 + $0x468] sm:$0xff]
    %v1850 = vld [vmem:[#allocation5 + $0x470] sm:$0xff]
    %v1851 = vld [vmem:[#allocation5 + $0x478] sm:$0xff]
    %v1852 = vld [vmem:[#allocation5 + $0x480] sm:$0xff]
    %v1853 = vld [vmem:[#allocation5 + $0x488] sm:$0xff]
    %v1854 = vld [vmem:[#allocation5 + $0x490] sm:$0xff]
    %v1855 = vld [vmem:[#allocation5 + $0x498] sm:$0xff]
    %v1856 = vld [vmem:[#allocation5 + $0x4a0] sm:$0xff]
    %v1857 = vld [vmem:[#allocation5 + $0x4a8] sm:$0xff]
    %v1858 = vld [vmem:[#allocation5 + $0x4b0] sm:$0xff]
    %v1859 = vld [vmem:[#allocation5 + $0x4b8] sm:$0xff]
    %v1860 = vld [vmem:[#allocation5 + $0x4c0] sm:$0xff]
    %v1861 = vld [vmem:[#allocation5 + $0x4c8] sm:$0xff]
    %v1862 = vld [vmem:[#allocation5 + $0x4d0] sm:$0xff]
    %v1863 = vld [vmem:[#allocation5 + $0x4d8] sm:$0xff]
    %v1864 = vld [vmem:[#allocation5 + $0x4e0] sm:$0xff]
    %v1865 = vld [vmem:[#allocation5 + $0x4e8] sm:$0xff]
    %v1866 = vld [vmem:[#allocation5 + $0x4f0] sm:$0xff]
    %v1867 = vld [vmem:[#allocation5 + $0x4f8] sm:$0xff]
    %v1868 = vld [vmem:[#allocation5 + $0x500] sm:$0xff]
    %v1869 = vld [vmem:[#allocation5 + $0x508] sm:$0xff]
    %v1870 = vld [vmem:[#allocation5 + $0x510] sm:$0xff]
    %v1871 = vld [vmem:[#allocation5 + $0x518] sm:$0xff]
    %v1872 = vld [vmem:[#allocation5 + $0x520] sm:$0xff]
    %v1873 = vld [vmem:[#allocation5 + $0x528] sm:$0xff]
    %v1874 = vld [vmem:[#allocation5 + $0x530] sm:$0xff]
    %v1875 = vld [vmem:[#allocation5 + $0x538] sm:$0xff]
    %v1876 = vld [vmem:[#allocation5 + $0x540] sm:$0xff]
    %v1877 = vld [vmem:[#allocation5 + $0x548] sm:$0xff]
    %v1878 = vld [vmem:[#allocation5 + $0x550] sm:$0xff]
    %v1879 = vld [vmem:[#allocation5 + $0x558] sm:$0xff]
    %v1880 = vld [vmem:[#allocation5 + $0x560] sm:$0xff]
    %v1881 = vld [vmem:[#allocation5 + $0x568] sm:$0xff]
    %v1882 = vld [vmem:[#allocation5 + $0x570] sm:$0xff]
    %v1883 = vld [vmem:[#allocation5 + $0x578] sm:$0xff]
    %v1884 = vld [vmem:[#allocation5 + $0x580] sm:$0xff]
    %v1885 = vld [vmem:[#allocation5 + $0x588] sm:$0xff]
    %v1886 = vld [vmem:[#allocation5 + $0x590] sm:$0xff]
    %v1887 = vld [vmem:[#allocation5 + $0x598] sm:$0xff]
    %v1888 = vld [vmem:[#allocation5 + $0x5a0] sm:$0xff]
    %v1889 = vld [vmem:[#allocation5 + $0x5a8] sm:$0xff]
    %v1890 = vld [vmem:[#allocation5 + $0x5b0] sm:$0xff]
    %v1891 = vld [vmem:[#allocation5 + $0x5b8] sm:$0xff]
    %v1892 = vld [vmem:[#allocation5 + $0x5c0] sm:$0xff]
    %v1893 = vld [vmem:[#allocation5 + $0x5c8] sm:$0xff]
    %v1894 = vld [vmem:[#allocation5 + $0x5d0] sm:$0xff]
    %v1895 = vld [vmem:[#allocation5 + $0x5d8] sm:$0xff]
    %v1896 = vld [vmem:[#allocation5 + $0x5e0] sm:$0xff]
    %v1897 = vld [vmem:[#allocation5 + $0x5e8] sm:$0xff]
    %v1898 = vld [vmem:[#allocation5 + $0x5f0] sm:$0xff]
    %v1899 = vld [vmem:[#allocation5 + $0x5f8] sm:$0xff]
    %v1900 = vld [vmem:[%s4] sm:$0x3f]
    %v1902 = vlaneseq
    %v1903 = vshrl.u32 %v1902, 7
    %v1904 = vsub.s32 0, %v1903
    %v1905 = vrot.slane %v1900, %v1904
    %v1906 = vlaneseq
    %v1907 = vshrl.u32 %v1906, 7
    %v1908 = vsub.s32 1, %v1907
    %v1909 = vrot.slane %v1900, %v1908
    %v1910 = vlaneseq
    %v1911 = vshrl.u32 %v1910, 7
    %v1912 = vsub.s32 2, %v1911
    %v1913 = vrot.slane %v1900, %v1912
    %v1914 = vlaneseq
    %v1915 = vshrl.u32 %v1914, 7
    %v1916 = vsub.s32 3, %v1915
    %v1917 = vrot.slane %v1900, %v1916
    %v1918 = vlaneseq
    %v1919 = vshrl.u32 %v1918, 7
    %v1920 = vsub.s32 4, %v1919
    %v1921 = vrot.slane %v1900, %v1920
    %v1922 = vlaneseq
    %v1923 = vshrl.u32 %v1922, 7
    %v1924 = vsub.s32 5, %v1923
    %v1925 = vrot.slane %v1900, %v1924
    %v2124 = vunpack.c.l.b16 %v1708
    %v2125 = vunpack.c.h.b16 %v1708
    %v2126 = vunpack.c.l.b16 %v1709
    %v2127 = vunpack.c.h.b16 %v1709
    %v2128 = vunpack.c.l.b16 %v1710
    %v2129 = vunpack.c.h.b16 %v1710
    %v2130 = vunpack.c.l.b16 %v1711
    %v2131 = vunpack.c.h.b16 %v1711
    %v2132 = vunpack.c.l.b16 %v1712
    %v2133 = vunpack.c.h.b16 %v1712
    %v2134 = vunpack.c.l.b16 %v1713
    %v2135 = vunpack.c.h.b16 %v1713
    %v2136 = vunpack.c.l.b16 %v1714
    %v2137 = vunpack.c.h.b16 %v1714
    %v2138 = vunpack.c.l.b16 %v1715
    %v2139 = vunpack.c.h.b16 %v1715
    %v2140 = vunpack.c.l.b16 %v1716
    %v2141 = vunpack.c.h.b16 %v1716
    %v2142 = vunpack.c.l.b16 %v1717
    %v2143 = vunpack.c.h.b16 %v1717
    %v2144 = vunpack.c.l.b16 %v1718
    %v2145 = vunpack.c.h.b16 %v1718
    %v2146 = vunpack.c.l.b16 %v1719
    %v2147 = vunpack.c.h.b16 %v1719
    %v2148 = vunpack.c.l.b16 %v1720
    %v2149 = vunpack.c.h.b16 %v1720
    %v2150 = vunpack.c.l.b16 %v1721
    %v2151 = vunpack.c.h.b16 %v1721
    %v2152 = vunpack.c.l.b16 %v1722
    %v2153 = vunpack.c.h.b16 %v1722
    %v2154 = vunpack.c.l.b16 %v1723
    %v2155 = vunpack.c.h.b16 %v1723
    %v2156 = vunpack.c.l.b16 %v1724
    %v2157 = vunpack.c.h.b16 %v1724
    %v2158 = vunpack.c.l.b16 %v1725
    %v2159 = vunpack.c.h.b16 %v1725
    %v2160 = vunpack.c.l.b16 %v1726
    %v2161 = vunpack.c.h.b16 %v1726
    %v2162 = vunpack.c.l.b16 %v1727
    %v2163 = vunpack.c.h.b16 %v1727
    %v2164 = vunpack.c.l.b16 %v1728
    %v2165 = vunpack.c.h.b16 %v1728
    %v2166 = vunpack.c.l.b16 %v1729
    %v2167 = vunpack.c.h.b16 %v1729
    %v2168 = vunpack.c.l.b16 %v1730
    %v2169 = vunpack.c.h.b16 %v1730
    %v2170 = vunpack.c.l.b16 %v1731
    %v2171 = vunpack.c.h.b16 %v1731
    %v2172 = vunpack.c.l.b16 %v1732
    %v2173 = vunpack.c.h.b16 %v1732
    %v2174 = vunpack.c.l.b16 %v1733
    %v2175 = vunpack.c.h.b16 %v1733
    %v2176 = vunpack.c.l.b16 %v1734
    %v2177 = vunpack.c.h.b16 %v1734
    %v2178 = vunpack.c.l.b16 %v1735
    %v2179 = vunpack.c.h.b16 %v1735
    %v2180 = vunpack.c.l.b16 %v1736
    %v2181 = vunpack.c.h.b16 %v1736
    %v2182 = vunpack.c.l.b16 %v1737
    %v2183 = vunpack.c.h.b16 %v1737
    %v2184 = vunpack.c.l.b16 %v1738
    %v2185 = vunpack.c.h.b16 %v1738
    %v2186 = vunpack.c.l.b16 %v1739
    %v2187 = vunpack.c.h.b16 %v1739
    %v2188 = vunpack.c.l.b16 %v1740
    %v2189 = vunpack.c.h.b16 %v1740
    %v2190 = vunpack.c.l.b16 %v1741
    %v2191 = vunpack.c.h.b16 %v1741
    %v2192 = vunpack.c.l.b16 %v1742
    %v2193 = vunpack.c.h.b16 %v1742
    %v2194 = vunpack.c.l.b16 %v1743
    %v2195 = vunpack.c.h.b16 %v1743
    %v2196 = vunpack.c.l.b16 %v1744
    %v2197 = vunpack.c.h.b16 %v1744
    %v2198 = vunpack.c.l.b16 %v1745
    %v2199 = vunpack.c.h.b16 %v1745
    %v2200 = vunpack.c.l.b16 %v1746
    %v2201 = vunpack.c.h.b16 %v1746
    %v2202 = vunpack.c.l.b16 %v1747
    %v2203 = vunpack.c.h.b16 %v1747
    %v2204 = vunpack.c.l.b16 %v1748
    %v2205 = vunpack.c.h.b16 %v1748
    %v2206 = vunpack.c.l.b16 %v1749
    %v2207 = vunpack.c.h.b16 %v1749
    %v2208 = vunpack.c.l.b16 %v1750
    %v2209 = vunpack.c.h.b16 %v1750
    %v2210 = vunpack.c.l.b16 %v1751
    %v2211 = vunpack.c.h.b16 %v1751
    %v2212 = vunpack.c.l.b16 %v1752
    %v2213 = vunpack.c.h.b16 %v1752
    %v2214 = vunpack.c.l.b16 %v1753
    %v2215 = vunpack.c.h.b16 %v1753
    %v2216 = vunpack.c.l.b16 %v1754
    %v2217 = vunpack.c.h.b16 %v1754
    %v2218 = vunpack.c.l.b16 %v1755
    %v2219 = vunpack.c.h.b16 %v1755
    %v2220 = vunpack.c.l.b16 %v1756
    %v2221 = vunpack.c.h.b16 %v1756
    %v2222 = vunpack.c.l.b16 %v1757
    %v2223 = vunpack.c.h.b16 %v1757
    %v2224 = vunpack.c.l.b16 %v1758
    %v2225 = vunpack.c.h.b16 %v1758
    %v2226 = vunpack.c.l.b16 %v1759
    %v2227 = vunpack.c.h.b16 %v1759
    %v2228 = vunpack.c.l.b16 %v1760
    %v2229 = vunpack.c.h.b16 %v1760
    %v2230 = vunpack.c.l.b16 %v1761
    %v2231 = vunpack.c.h.b16 %v1761
    %v2232 = vunpack.c.l.b16 %v1762
    %v2233 = vunpack.c.h.b16 %v1762
    %v2234 = vunpack.c.l.b16 %v1763
    %v2235 = vunpack.c.h.b16 %v1763
    %v2236 = vunpack.c.l.b16 %v1764
    %v2237 = vunpack.c.h.b16 %v1764
    %v2238 = vunpack.c.l.b16 %v1765
    %v2239 = vunpack.c.h.b16 %v1765
    %v2240 = vunpack.c.l.b16 %v1766
    %v2241 = vunpack.c.h.b16 %v1766
    %v2242 = vunpack.c.l.b16 %v1767
    %v2243 = vunpack.c.h.b16 %v1767
    %v2244 = vunpack.c.l.b16 %v1768
    %v2245 = vunpack.c.h.b16 %v1768
    %v2246 = vunpack.c.l.b16 %v1769
    %v2247 = vunpack.c.h.b16 %v1769
    %v2248 = vunpack.c.l.b16 %v1770
    %v2249 = vunpack.c.h.b16 %v1770
    %v2250 = vunpack.c.l.b16 %v1771
    %v2251 = vunpack.c.h.b16 %v1771
    %v2252 = vunpack.c.l.b16 %v1772
    %v2253 = vunpack.c.h.b16 %v1772
    %v2254 = vunpack.c.l.b16 %v1773
    %v2255 = vunpack.c.h.b16 %v1773
    %v2256 = vunpack.c.l.b16 %v1774
    %v2257 = vunpack.c.h.b16 %v1774
    %v2258 = vunpack.c.l.b16 %v1775
    %v2259 = vunpack.c.h.b16 %v1775
    %v2260 = vunpack.c.l.b16 %v1776
    %v2261 = vunpack.c.h.b16 %v1776
    %v2262 = vunpack.c.l.b16 %v1777
    %v2263 = vunpack.c.h.b16 %v1777
    %v2264 = vunpack.c.l.b16 %v1778
    %v2265 = vunpack.c.h.b16 %v1778
    %v2266 = vunpack.c.l.b16 %v1779
    %v2267 = vunpack.c.h.b16 %v1779
    %v2268 = vunpack.c.l.b16 %v1780
    %v2269 = vunpack.c.h.b16 %v1780
    %v2270 = vunpack.c.l.b16 %v1781
    %v2271 = vunpack.c.h.b16 %v1781
    %v2272 = vunpack.c.l.b16 %v1782
    %v2273 = vunpack.c.h.b16 %v1782
    %v2274 = vunpack.c.l.b16 %v1783
    %v2275 = vunpack.c.h.b16 %v1783
    %v2276 = vunpack.c.l.b16 %v1784
    %v2277 = vunpack.c.h.b16 %v1784
    %v2278 = vunpack.c.l.b16 %v1785
    %v2279 = vunpack.c.h.b16 %v1785
    %v2280 = vunpack.c.l.b16 %v1786
    %v2281 = vunpack.c.h.b16 %v1786
    %v2282 = vunpack.c.l.b16 %v1787
    %v2283 = vunpack.c.h.b16 %v1787
    %v2284 = vunpack.c.l.b16 %v1788
    %v2285 = vunpack.c.h.b16 %v1788
    %v2286 = vunpack.c.l.b16 %v1789
    %v2287 = vunpack.c.h.b16 %v1789
    %v2288 = vunpack.c.l.b16 %v1790
    %v2289 = vunpack.c.h.b16 %v1790
    %v2290 = vunpack.c.l.b16 %v1791
    %v2291 = vunpack.c.h.b16 %v1791
    %v2292 = vunpack.c.l.b16 %v1792
    %v2293 = vunpack.c.h.b16 %v1792
    %v2294 = vunpack.c.l.b16 %v1793
    %v2295 = vunpack.c.h.b16 %v1793
    %v2296 = vunpack.c.l.b16 %v1794
    %v2297 = vunpack.c.h.b16 %v1794
    %v2298 = vunpack.c.l.b16 %v1795
    %v2299 = vunpack.c.h.b16 %v1795
    %v2300 = vunpack.c.l.b16 %v1796
    %v2301 = vunpack.c.h.b16 %v1796
    %v2302 = vunpack.c.l.b16 %v1797
    %v2303 = vunpack.c.h.b16 %v1797
    %v2304 = vunpack.c.l.b16 %v1798
    %v2305 = vunpack.c.h.b16 %v1798
    %v2306 = vunpack.c.l.b16 %v1799
    %v2307 = vunpack.c.h.b16 %v1799
    %v2308 = vunpack.c.l.b16 %v1800
    %v2309 = vunpack.c.h.b16 %v1800
    %v2310 = vunpack.c.l.b16 %v1801
    %v2311 = vunpack.c.h.b16 %v1801
    %v2312 = vunpack.c.l.b16 %v1802
    %v2313 = vunpack.c.h.b16 %v1802
    %v2314 = vunpack.c.l.b16 %v1803
    %v2315 = vunpack.c.h.b16 %v1803
    %v2316 = vunpack.c.l.b16 %v1804
    %v2317 = vunpack.c.h.b16 %v1804
    %v2318 = vunpack.c.l.b16 %v1805
    %v2319 = vunpack.c.h.b16 %v1805
    %v2320 = vunpack.c.l.b16 %v1806
    %v2321 = vunpack.c.h.b16 %v1806
    %v2322 = vunpack.c.l.b16 %v1807
    %v2323 = vunpack.c.h.b16 %v1807
    %v2324 = vunpack.c.l.b16 %v1808
    %v2325 = vunpack.c.h.b16 %v1808
    %v2326 = vunpack.c.l.b16 %v1809
    %v2327 = vunpack.c.h.b16 %v1809
    %v2328 = vunpack.c.l.b16 %v1810
    %v2329 = vunpack.c.h.b16 %v1810
    %v2330 = vunpack.c.l.b16 %v1811
    %v2331 = vunpack.c.h.b16 %v1811
    %v2332 = vunpack.c.l.b16 %v1812
    %v2333 = vunpack.c.h.b16 %v1812
    %v2334 = vunpack.c.l.b16 %v1813
    %v2335 = vunpack.c.h.b16 %v1813
    %v2336 = vunpack.c.l.b16 %v1814
    %v2337 = vunpack.c.h.b16 %v1814
    %v2338 = vunpack.c.l.b16 %v1815
    %v2339 = vunpack.c.h.b16 %v1815
    %v2340 = vunpack.c.l.b16 %v1816
    %v2341 = vunpack.c.h.b16 %v1816
    %v2342 = vunpack.c.l.b16 %v1817
    %v2343 = vunpack.c.h.b16 %v1817
    %v2344 = vunpack.c.l.b16 %v1818
    %v2345 = vunpack.c.h.b16 %v1818
    %v2346 = vunpack.c.l.b16 %v1819
    %v2347 = vunpack.c.h.b16 %v1819
    %v2348 = vunpack.c.l.b16 %v1820
    %v2349 = vunpack.c.h.b16 %v1820
    %v2350 = vunpack.c.l.b16 %v1821
    %v2351 = vunpack.c.h.b16 %v1821
    %v2352 = vunpack.c.l.b16 %v1822
    %v2353 = vunpack.c.h.b16 %v1822
    %v2354 = vunpack.c.l.b16 %v1823
    %v2355 = vunpack.c.h.b16 %v1823
    %v2356 = vunpack.c.l.b16 %v1824
    %v2357 = vunpack.c.h.b16 %v1824
    %v2358 = vunpack.c.l.b16 %v1825
    %v2359 = vunpack.c.h.b16 %v1825
    %v2360 = vunpack.c.l.b16 %v1826
    %v2361 = vunpack.c.h.b16 %v1826
    %v2362 = vunpack.c.l.b16 %v1827
    %v2363 = vunpack.c.h.b16 %v1827
    %v2364 = vunpack.c.l.b16 %v1828
    %v2365 = vunpack.c.h.b16 %v1828
    %v2366 = vunpack.c.l.b16 %v1829
    %v2367 = vunpack.c.h.b16 %v1829
    %v2368 = vunpack.c.l.b16 %v1830
    %v2369 = vunpack.c.h.b16 %v1830
    %v2370 = vunpack.c.l.b16 %v1831
    %v2371 = vunpack.c.h.b16 %v1831
    %v2372 = vunpack.c.l.b16 %v1832
    %v2373 = vunpack.c.h.b16 %v1832
    %v2374 = vunpack.c.l.b16 %v1833
    %v2375 = vunpack.c.h.b16 %v1833
    %v2376 = vunpack.c.l.b16 %v1834
    %v2377 = vunpack.c.h.b16 %v1834
    %v2378 = vunpack.c.l.b16 %v1835
    %v2379 = vunpack.c.h.b16 %v1835
    %v2380 = vunpack.c.l.b16 %v1836
    %v2381 = vunpack.c.h.b16 %v1836
    %v2382 = vunpack.c.l.b16 %v1837
    %v2383 = vunpack.c.h.b16 %v1837
    %v2384 = vunpack.c.l.b16 %v1838
    %v2385 = vunpack.c.h.b16 %v1838
    %v2386 = vunpack.c.l.b16 %v1839
    %v2387 = vunpack.c.h.b16 %v1839
    %v2388 = vunpack.c.l.b16 %v1840
    %v2389 = vunpack.c.h.b16 %v1840
    %v2390 = vunpack.c.l.b16 %v1841
    %v2391 = vunpack.c.h.b16 %v1841
    %v2392 = vunpack.c.l.b16 %v1842
    %v2393 = vunpack.c.h.b16 %v1842
    %v2394 = vunpack.c.l.b16 %v1843
    %v2395 = vunpack.c.h.b16 %v1843
    %v2396 = vunpack.c.l.b16 %v1844
    %v2397 = vunpack.c.h.b16 %v1844
    %v2398 = vunpack.c.l.b16 %v1845
    %v2399 = vunpack.c.h.b16 %v1845
    %v2400 = vunpack.c.l.b16 %v1846
    %v2401 = vunpack.c.h.b16 %v1846
    %v2402 = vunpack.c.l.b16 %v1847
    %v2403 = vunpack.c.h.b16 %v1847
    %v2404 = vunpack.c.l.b16 %v1848
    %v2405 = vunpack.c.h.b16 %v1848
    %v2406 = vunpack.c.l.b16 %v1849
    %v2407 = vunpack.c.h.b16 %v1849
    %v2408 = vunpack.c.l.b16 %v1850
    %v2409 = vunpack.c.h.b16 %v1850
    %v2410 = vunpack.c.l.b16 %v1851
    %v2411 = vunpack.c.h.b16 %v1851
    %v2412 = vunpack.c.l.b16 %v1852
    %v2413 = vunpack.c.h.b16 %v1852
    %v2414 = vunpack.c.l.b16 %v1853
    %v2415 = vunpack.c.h.b16 %v1853
    %v2416 = vunpack.c.l.b16 %v1854
    %v2417 = vunpack.c.h.b16 %v1854
    %v2418 = vunpack.c.l.b16 %v1855
    %v2419 = vunpack.c.h.b16 %v1855
    %v2420 = vunpack.c.l.b16 %v1856
    %v2421 = vunpack.c.h.b16 %v1856
    %v2422 = vunpack.c.l.b16 %v1857
    %v2423 = vunpack.c.h.b16 %v1857
    %v2424 = vunpack.c.l.b16 %v1858
    %v2425 = vunpack.c.h.b16 %v1858
    %v2426 = vunpack.c.l.b16 %v1859
    %v2427 = vunpack.c.h.b16 %v1859
    %v2428 = vunpack.c.l.b16 %v1860
    %v2429 = vunpack.c.h.b16 %v1860
    %v2430 = vunpack.c.l.b16 %v1861
    %v2431 = vunpack.c.h.b16 %v1861
    %v2432 = vunpack.c.l.b16 %v1862
    %v2433 = vunpack.c.h.b16 %v1862
    %v2434 = vunpack.c.l.b16 %v1863
    %v2435 = vunpack.c.h.b16 %v1863
    %v2436 = vunpack.c.l.b16 %v1864
    %v2437 = vunpack.c.h.b16 %v1864
    %v2438 = vunpack.c.l.b16 %v1865
    %v2439 = vunpack.c.h.b16 %v1865
    %v2440 = vunpack.c.l.b16 %v1866
    %v2441 = vunpack.c.h.b16 %v1866
    %v2442 = vunpack.c.l.b16 %v1867
    %v2443 = vunpack.c.h.b16 %v1867
    %v2444 = vunpack.c.l.b16 %v1868
    %v2445 = vunpack.c.h.b16 %v1868
    %v2446 = vunpack.c.l.b16 %v1869
    %v2447 = vunpack.c.h.b16 %v1869
    %v2448 = vunpack.c.l.b16 %v1870
    %v2449 = vunpack.c.h.b16 %v1870
    %v2450 = vunpack.c.l.b16 %v1871
    %v2451 = vunpack.c.h.b16 %v1871
    %v2452 = vunpack.c.l.b16 %v1872
    %v2453 = vunpack.c.h.b16 %v1872
    %v2454 = vunpack.c.l.b16 %v1873
    %v2455 = vunpack.c.h.b16 %v1873
    %v2456 = vunpack.c.l.b16 %v1874
    %v2457 = vunpack.c.h.b16 %v1874
    %v2458 = vunpack.c.l.b16 %v1875
    %v2459 = vunpack.c.h.b16 %v1875
    %v2460 = vunpack.c.l.b16 %v1876
    %v2461 = vunpack.c.h.b16 %v1876
    %v2462 = vunpack.c.l.b16 %v1877
    %v2463 = vunpack.c.h.b16 %v1877
    %v2464 = vunpack.c.l.b16 %v1878
    %v2465 = vunpack.c.h.b16 %v1878
    %v2466 = vunpack.c.l.b16 %v1879
    %v2467 = vunpack.c.h.b16 %v1879
    %v2468 = vunpack.c.l.b16 %v1880
    %v2469 = vunpack.c.h.b16 %v1880
    %v2470 = vunpack.c.l.b16 %v1881
    %v2471 = vunpack.c.h.b16 %v1881
    %v2472 = vunpack.c.l.b16 %v1882
    %v2473 = vunpack.c.h.b16 %v1882
    %v2474 = vunpack.c.l.b16 %v1883
    %v2475 = vunpack.c.h.b16 %v1883
    %v2476 = vunpack.c.l.b16 %v1884
    %v2477 = vunpack.c.h.b16 %v1884
    %v2478 = vunpack.c.l.b16 %v1885
    %v2479 = vunpack.c.h.b16 %v1885
    %v2480 = vunpack.c.l.b16 %v1886
    %v2481 = vunpack.c.h.b16 %v1886
    %v2482 = vunpack.c.l.b16 %v1887
    %v2483 = vunpack.c.h.b16 %v1887
    %v2484 = vunpack.c.l.b16 %v1888
    %v2485 = vunpack.c.h.b16 %v1888
    %v2486 = vunpack.c.l.b16 %v1889
    %v2487 = vunpack.c.h.b16 %v1889
    %v2488 = vunpack.c.l.b16 %v1890
    %v2489 = vunpack.c.h.b16 %v1890
    %v2490 = vunpack.c.l.b16 %v1891
    %v2491 = vunpack.c.h.b16 %v1891
    %v2492 = vunpack.c.l.b16 %v1892
    %v2493 = vunpack.c.h.b16 %v1892
    %v2494 = vunpack.c.l.b16 %v1893
    %v2495 = vunpack.c.h.b16 %v1893
    %v2496 = vunpack.c.l.b16 %v1894
    %v2497 = vunpack.c.h.b16 %v1894
    %v2498 = vunpack.c.l.b16 %v1895
    %v2499 = vunpack.c.h.b16 %v1895
    %v2500 = vunpack.c.l.b16 %v1896
    %v2501 = vunpack.c.h.b16 %v1896
    %v2502 = vunpack.c.l.b16 %v1897
    %v2503 = vunpack.c.h.b16 %v1897
    %v2504 = vunpack.c.l.b16 %v1898
    %v2505 = vunpack.c.h.b16 %v1898
    %v2506 = vunpack.c.l.b16 %v1899
    %v2507 = vunpack.c.h.b16 %v1899
    %v2508 = vpack.c.b16 %v2130, %v2124
    %v2509 = vpack.c.b16 %v2131, %v2125
    %v2510 = vpack.c.b16 %v2132, %v2126
    %v2511 = vpack.c.b16 %v2133, %v2127
    %v2512 = vpack.c.b16 %v2134, %v2128
    %v2513 = vpack.c.b16 %v2135, %v2129
    %v2514 = vpack.c.b16 %v2142, %v2136
    %v2515 = vpack.c.b16 %v2143, %v2137
    %v2516 = vpack.c.b16 %v2144, %v2138
    %v2517 = vpack.c.b16 %v2145, %v2139
    %v2518 = vpack.c.b16 %v2146, %v2140
    %v2519 = vpack.c.b16 %v2147, %v2141
    %v2520 = vpack.c.b16 %v2154, %v2148
    %v2521 = vpack.c.b16 %v2155, %v2149
    %v2522 = vpack.c.b16 %v2156, %v2150
    %v2523 = vpack.c.b16 %v2157, %v2151
    %v2524 = vpack.c.b16 %v2158, %v2152
    %v2525 = vpack.c.b16 %v2159, %v2153
    %v2526 = vpack.c.b16 %v2166, %v2160
    %v2527 = vpack.c.b16 %v2167, %v2161
    %v2528 = vpack.c.b16 %v2168, %v2162
    %v2529 = vpack.c.b16 %v2169, %v2163
    %v2530 = vpack.c.b16 %v2170, %v2164
    %v2531 = vpack.c.b16 %v2171, %v2165
    %v2532 = vpack.c.b16 %v2178, %v2172
    %v2533 = vpack.c.b16 %v2179, %v2173
    %v2534 = vpack.c.b16 %v2180, %v2174
    %v2535 = vpack.c.b16 %v2181, %v2175
    %v2536 = vpack.c.b16 %v2182, %v2176
    %v2537 = vpack.c.b16 %v2183, %v2177
    %v2538 = vpack.c.b16 %v2190, %v2184
    %v2539 = vpack.c.b16 %v2191, %v2185
    %v2540 = vpack.c.b16 %v2192, %v2186
    %v2541 = vpack.c.b16 %v2193, %v2187
    %v2542 = vpack.c.b16 %v2194, %v2188
    %v2543 = vpack.c.b16 %v2195, %v2189
    %v2544 = vpack.c.b16 %v2202, %v2196
    %v2545 = vpack.c.b16 %v2203, %v2197
    %v2546 = vpack.c.b16 %v2204, %v2198
    %v2547 = vpack.c.b16 %v2205, %v2199
    %v2548 = vpack.c.b16 %v2206, %v2200
    %v2549 = vpack.c.b16 %v2207, %v2201
    %v2550 = vpack.c.b16 %v2214, %v2208
    %v2551 = vpack.c.b16 %v2215, %v2209
    %v2552 = vpack.c.b16 %v2216, %v2210
    %v2553 = vpack.c.b16 %v2217, %v2211
    %v2554 = vpack.c.b16 %v2218, %v2212
    %v2555 = vpack.c.b16 %v2219, %v2213
    %v2556 = vpack.c.b16 %v2226, %v2220
    %v2557 = vpack.c.b16 %v2227, %v2221
    %v2558 = vpack.c.b16 %v2228, %v2222
    %v2559 = vpack.c.b16 %v2229, %v2223
    %v2560 = vpack.c.b16 %v2230, %v2224
    %v2561 = vpack.c.b16 %v2231, %v2225
    %v2562 = vpack.c.b16 %v2238, %v2232
    %v2563 = vpack.c.b16 %v2239, %v2233
    %v2564 = vpack.c.b16 %v2240, %v2234
    %v2565 = vpack.c.b16 %v2241, %v2235
    %v2566 = vpack.c.b16 %v2242, %v2236
    %v2567 = vpack.c.b16 %v2243, %v2237
    %v2568 = vpack.c.b16 %v2250, %v2244
    %v2569 = vpack.c.b16 %v2251, %v2245
    %v2570 = vpack.c.b16 %v2252, %v2246
    %v2571 = vpack.c.b16 %v2253, %v2247
    %v2572 = vpack.c.b16 %v2254, %v2248
    %v2573 = vpack.c.b16 %v2255, %v2249
    %v2574 = vpack.c.b16 %v2262, %v2256
    %v2575 = vpack.c.b16 %v2263, %v2257
    %v2576 = vpack.c.b16 %v2264, %v2258
    %v2577 = vpack.c.b16 %v2265, %v2259
    %v2578 = vpack.c.b16 %v2266, %v2260
    %v2579 = vpack.c.b16 %v2267, %v2261
    %v2580 = vpack.c.b16 %v2274, %v2268
    %v2581 = vpack.c.b16 %v2275, %v2269
    %v2582 = vpack.c.b16 %v2276, %v2270
    %v2583 = vpack.c.b16 %v2277, %v2271
    %v2584 = vpack.c.b16 %v2278, %v2272
    %v2585 = vpack.c.b16 %v2279, %v2273
    %v2586 = vpack.c.b16 %v2286, %v2280
    %v2587 = vpack.c.b16 %v2287, %v2281
    %v2588 = vpack.c.b16 %v2288, %v2282
    %v2589 = vpack.c.b16 %v2289, %v2283
    %v2590 = vpack.c.b16 %v2290, %v2284
    %v2591 = vpack.c.b16 %v2291, %v2285
    %v2592 = vpack.c.b16 %v2298, %v2292
    %v2593 = vpack.c.b16 %v2299, %v2293
    %v2594 = vpack.c.b16 %v2300, %v2294
    %v2595 = vpack.c.b16 %v2301, %v2295
    %v2596 = vpack.c.b16 %v2302, %v2296
    %v2597 = vpack.c.b16 %v2303, %v2297
    %v2598 = vpack.c.b16 %v2310, %v2304
    %v2599 = vpack.c.b16 %v2311, %v2305
    %v2600 = vpack.c.b16 %v2312, %v2306
    %v2601 = vpack.c.b16 %v2313, %v2307
    %v2602 = vpack.c.b16 %v2314, %v2308
    %v2603 = vpack.c.b16 %v2315, %v2309
    %v2604 = vpack.c.b16 %v2322, %v2316
    %v2605 = vpack.c.b16 %v2323, %v2317
    %v2606 = vpack.c.b16 %v2324, %v2318
    %v2607 = vpack.c.b16 %v2325, %v2319
    %v2608 = vpack.c.b16 %v2326, %v2320
    %v2609 = vpack.c.b16 %v2327, %v2321
    %v2610 = vpack.c.b16 %v2334, %v2328
    %v2611 = vpack.c.b16 %v2335, %v2329
    %v2612 = vpack.c.b16 %v2336, %v2330
    %v2613 = vpack.c.b16 %v2337, %v2331
    %v2614 = vpack.c.b16 %v2338, %v2332
    %v2615 = vpack.c.b16 %v2339, %v2333
    %v2616 = vpack.c.b16 %v2346, %v2340
    %v2617 = vpack.c.b16 %v2347, %v2341
    %v2618 = vpack.c.b16 %v2348, %v2342
    %v2619 = vpack.c.b16 %v2349, %v2343
    %v2620 = vpack.c.b16 %v2350, %v2344
    %v2621 = vpack.c.b16 %v2351, %v2345
    %v2622 = vpack.c.b16 %v2358, %v2352
    %v2623 = vpack.c.b16 %v2359, %v2353
    %v2624 = vpack.c.b16 %v2360, %v2354
    %v2625 = vpack.c.b16 %v2361, %v2355
    %v2626 = vpack.c.b16 %v2362, %v2356
    %v2627 = vpack.c.b16 %v2363, %v2357
    %v2628 = vpack.c.b16 %v2370, %v2364
    %v2629 = vpack.c.b16 %v2371, %v2365
    %v2630 = vpack.c.b16 %v2372, %v2366
    %v2631 = vpack.c.b16 %v2373, %v2367
    %v2632 = vpack.c.b16 %v2374, %v2368
    %v2633 = vpack.c.b16 %v2375, %v2369
    %v2634 = vpack.c.b16 %v2382, %v2376
    %v2635 = vpack.c.b16 %v2383, %v2377
    %v2636 = vpack.c.b16 %v2384, %v2378
    %v2637 = vpack.c.b16 %v2385, %v2379
    %v2638 = vpack.c.b16 %v2386, %v2380
    %v2639 = vpack.c.b16 %v2387, %v2381
    %v2640 = vpack.c.b16 %v2394, %v2388
    %v2641 = vpack.c.b16 %v2395, %v2389
    %v2642 = vpack.c.b16 %v2396, %v2390
    %v2643 = vpack.c.b16 %v2397, %v2391
    %v2644 = vpack.c.b16 %v2398, %v2392
    %v2645 = vpack.c.b16 %v2399, %v2393
    %v2646 = vpack.c.b16 %v2406, %v2400
    %v2647 = vpack.c.b16 %v2407, %v2401
    %v2648 = vpack.c.b16 %v2408, %v2402
    %v2649 = vpack.c.b16 %v2409, %v2403
    %v2650 = vpack.c.b16 %v2410, %v2404
    %v2651 = vpack.c.b16 %v2411, %v2405
    %v2652 = vpack.c.b16 %v2418, %v2412
    %v2653 = vpack.c.b16 %v2419, %v2413
    %v2654 = vpack.c.b16 %v2420, %v2414
    %v2655 = vpack.c.b16 %v2421, %v2415
    %v2656 = vpack.c.b16 %v2422, %v2416
    %v2657 = vpack.c.b16 %v2423, %v2417
    %v2658 = vpack.c.b16 %v2430, %v2424
    %v2659 = vpack.c.b16 %v2431, %v2425
    %v2660 = vpack.c.b16 %v2432, %v2426
    %v2661 = vpack.c.b16 %v2433, %v2427
    %v2662 = vpack.c.b16 %v2434, %v2428
    %v2663 = vpack.c.b16 %v2435, %v2429
    %v2664 = vpack.c.b16 %v2442, %v2436
    %v2665 = vpack.c.b16 %v2443, %v2437
    %v2666 = vpack.c.b16 %v2444, %v2438
    %v2667 = vpack.c.b16 %v2445, %v2439
    %v2668 = vpack.c.b16 %v2446, %v2440
    %v2669 = vpack.c.b16 %v2447, %v2441
    %v2670 = vpack.c.b16 %v2454, %v2448
    %v2671 = vpack.c.b16 %v2455, %v2449
    %v2672 = vpack.c.b16 %v2456, %v2450
    %v2673 = vpack.c.b16 %v2457, %v2451
    %v2674 = vpack.c.b16 %v2458, %v2452
    %v2675 = vpack.c.b16 %v2459, %v2453
    %v2676 = vpack.c.b16 %v2466, %v2460
    %v2677 = vpack.c.b16 %v2467, %v2461
    %v2678 = vpack.c.b16 %v2468, %v2462
    %v2679 = vpack.c.b16 %v2469, %v2463
    %v2680 = vpack.c.b16 %v2470, %v2464
    %v2681 = vpack.c.b16 %v2471, %v2465
    %v2682 = vpack.c.b16 %v2478, %v2472
    %v2683 = vpack.c.b16 %v2479, %v2473
    %v2684 = vpack.c.b16 %v2480, %v2474
    %v2685 = vpack.c.b16 %v2481, %v2475
    %v2686 = vpack.c.b16 %v2482, %v2476
    %v2687 = vpack.c.b16 %v2483, %v2477
    %v2688 = vpack.c.b16 %v2490, %v2484
    %v2689 = vpack.c.b16 %v2491, %v2485
    %v2690 = vpack.c.b16 %v2492, %v2486
    %v2691 = vpack.c.b16 %v2493, %v2487
    %v2692 = vpack.c.b16 %v2494, %v2488
    %v2693 = vpack.c.b16 %v2495, %v2489
    %v2694 = vpack.c.b16 %v2502, %v2496
    %v2695 = vpack.c.b16 %v2503, %v2497
    %v2696 = vpack.c.b16 %v2504, %v2498
    %v2697 = vpack.c.b16 %v2505, %v2499
    %v2698 = vpack.c.b16 %v2506, %v2500
    %v2699 = vpack.c.b16 %v2507, %v2501
    %2892 = vmatprep.subr.bf16.mxu0 %v2551
    %2893 = vmatpush1.bf16.msra.mxu0 %v2550
    %2894 = vmatprep.subr.bf16.mxu0 %v2545
    %2895 = vmatpush1.bf16.msra.mxu0 %v2544
    %2896 = vmatprep.subr.bf16.mxu0 %v2539
    %2897 = vmatpush1.bf16.msra.mxu0 %v2538
    %2898 = vmatprep.subr.bf16.mxu0 %v2533
    %2899 = vmatpush1.bf16.msra.mxu0 %v2532
    %2900 = vmatprep.subr.bf16.mxu0 %v2527
    %2901 = vmatpush1.bf16.msra.mxu0 %v2526
    %2902 = vmatprep.subr.bf16.mxu0 %v2521
    %2903 = vmatpush1.bf16.msra.mxu0 %v2520
    %2904 = vmatprep.subr.bf16.mxu0 %v2515
    %2905 = vmatpush1.bf16.msra.mxu0 %v2514
    %2906 = vmatprep.subr.bf16.mxu0 %v2509
    %2907 = vmatpush1.bf16.msra.mxu0 %v2508
    %2908 = vmatprep.subr.bf16.mxu0 %v2599
    %2909 = vmatpush2.bf16.msra.mxu0 %v2598
    %2910 = vmatprep.subr.bf16.mxu0 %v2593
    %2911 = vmatpush2.bf16.msra.mxu0 %v2592
    %2912 = vmatprep.subr.bf16.mxu0 %v2587
    %2913 = vmatpush2.bf16.msra.mxu0 %v2586
    %2914 = vmatprep.subr.bf16.mxu0 %v2581
    %2915 = vmatpush2.bf16.msra.mxu0 %v2580
    %2916 = vmatprep.subr.bf16.mxu0 %v2575
    %2917 = vmatpush2.bf16.msra.mxu0 %v2574
    %2918 = vmatprep.subr.bf16.mxu0 %v2569
    %2919 = vmatpush2.bf16.msra.mxu0 %v2568
    %2920 = vmatprep.subr.bf16.mxu0 %v2563
    %2921 = vmatpush2.bf16.msra.mxu0 %v2562
    %2922 = vmatprep.subr.bf16.mxu0 %v2557
    %2923 = vmatpush2.bf16.msra.mxu0 %v2556
    %2924 = vmatprep.mubr.bf16.mxu0 %v1705
    %2925 = vmatmul.mubr.bf16.gmra.mxu0 %v1704
    %v2926 = vpop.f32.mrf.mxu0
    %v2927 = vadd.f32 %v1905, %v2926
    %v2928 = vpop.f32.mrf.mxu0
    %v2929 = vadd.f32 %v1909, %v2928
    %v2930 = vpop.f32.mrf.mxu0
    %v2931 = vpop.f32.mrf.mxu0
    %2932 = vdwg.mxu0
    %2933 = vmatprep.subr.bf16.mxu0 %v2647
    %2934 = vmatpush1.bf16.msra.mxu0 %v2646
    %2935 = vmatprep.subr.bf16.mxu0 %v2641
    %2936 = vmatpush1.bf16.msra.mxu0 %v2640
    %2937 = vmatprep.subr.bf16.mxu0 %v2635
    %2938 = vmatpush1.bf16.msra.mxu0 %v2634
    %2939 = vmatprep.subr.bf16.mxu0 %v2629
    %2940 = vmatpush1.bf16.msra.mxu0 %v2628
    %2941 = vmatprep.subr.bf16.mxu0 %v2623
    %2942 = vmatpush1.bf16.msra.mxu0 %v2622
    %2943 = vmatprep.subr.bf16.mxu0 %v2617
    %2944 = vmatpush1.bf16.msra.mxu0 %v2616
    %2945 = vmatprep.subr.bf16.mxu0 %v2611
    %2946 = vmatpush1.bf16.msra.mxu0 %v2610
    %2947 = vmatprep.subr.bf16.mxu0 %v2605
    %2948 = vmatpush1.bf16.msra.mxu0 %v2604
    %2949 = vmatprep.subr.bf16.mxu0 %v2695
    %2950 = vmatpush2.bf16.msra.mxu0 %v2694
    %2951 = vmatprep.subr.bf16.mxu0 %v2689
    %2952 = vmatpush2.bf16.msra.mxu0 %v2688
    %2953 = vmatprep.subr.bf16.mxu0 %v2683
    %2954 = vmatpush2.bf16.msra.mxu0 %v2682
    %2955 = vmatprep.subr.bf16.mxu0 %v2677
    %2956 = vmatpush2.bf16.msra.mxu0 %v2676
    %2957 = vmatprep.subr.bf16.mxu0 %v2671
    %2958 = vmatpush2.bf16.msra.mxu0 %v2670
    %2959 = vmatprep.subr.bf16.mxu0 %v2665
    %2960 = vmatpush2.bf16.msra.mxu0 %v2664
    %2961 = vmatprep.subr.bf16.mxu0 %v2659
    %2962 = vmatpush2.bf16.msra.mxu0 %v2658
    %2963 = vmatprep.subr.bf16.mxu0 %v2653
    %2964 = vmatpush2.bf16.msra.mxu0 %v2652
    %2965 = vmatprep.mubr.bf16.mxu0 %v1707
    %2966 = vmatmul.mubr.bf16.gmra.mxu0 %v1706
    %v2967 = vpop.f32.mrf.mxu0
    %v2968 = vadd.f32 %v2927, %v2967
    %v2969 = vpop.f32.mrf.mxu0
    %v2970 = vadd.f32 %v2929, %v2969
    %v2971 = vpop.f32.mrf.mxu0
    %v2972 = vpop.f32.mrf.mxu0
    %2973 = vdwg.mxu0
    %2974 = vmatprep.subr.bf16.mxu0 %v2553
    %2975 = vmatpush1.bf16.msra.mxu0 %v2552
    %2976 = vmatprep.subr.bf16.mxu0 %v2547
    %2977 = vmatpush1.bf16.msra.mxu0 %v2546
    %2978 = vmatprep.subr.bf16.mxu0 %v2541
    %2979 = vmatpush1.bf16.msra.mxu0 %v2540
    %2980 = vmatprep.subr.bf16.mxu0 %v2535
    %2981 = vmatpush1.bf16.msra.mxu0 %v2534
    %2982 = vmatprep.subr.bf16.mxu0 %v2529
    %2983 = vmatpush1.bf16.msra.mxu0 %v2528
    %2984 = vmatprep.subr.bf16.mxu0 %v2523
    %2985 = vmatpush1.bf16.msra.mxu0 %v2522
    %2986 = vmatprep.subr.bf16.mxu0 %v2517
    %2987 = vmatpush1.bf16.msra.mxu0 %v2516
    %2988 = vmatprep.subr.bf16.mxu0 %v2511
    %2989 = vmatpush1.bf16.msra.mxu0 %v2510
    %2990 = vmatprep.subr.bf16.mxu0 %v2601
    %2991 = vmatpush2.bf16.msra.mxu0 %v2600
    %2992 = vmatprep.subr.bf16.mxu0 %v2595
    %2993 = vmatpush2.bf16.msra.mxu0 %v2594
    %2994 = vmatprep.subr.bf16.mxu0 %v2589
    %2995 = vmatpush2.bf16.msra.mxu0 %v2588
    %2996 = vmatprep.subr.bf16.mxu0 %v2583
    %2997 = vmatpush2.bf16.msra.mxu0 %v2582
    %2998 = vmatprep.subr.bf16.mxu0 %v2577
    %2999 = vmatpush2.bf16.msra.mxu0 %v2576
    %3000 = vmatprep.subr.bf16.mxu0 %v2571
    %3001 = vmatpush2.bf16.msra.mxu0 %v2570
    %3002 = vmatprep.subr.bf16.mxu0 %v2565
    %3003 = vmatpush2.bf16.msra.mxu0 %v2564
    %3004 = vmatprep.subr.bf16.mxu0 %v2559
    %3005 = vmatpush2.bf16.msra.mxu0 %v2558
    %3006 = vmatprep.mubr.bf16.mxu0 %v1705
    %3007 = vmatmul.mubr.bf16.gmra.mxu0 %v1704
    %v3008 = vpop.f32.mrf.mxu0
    %v3009 = vadd.f32 %v1913, %v3008
    %v3010 = vpop.f32.mrf.mxu0
    %v3011 = vadd.f32 %v1917, %v3010
    %v3012 = vpop.f32.mrf.mxu0
    %v3013 = vpop.f32.mrf.mxu0
    %3014 = vdwg.mxu0
    %3015 = vmatprep.subr.bf16.mxu0 %v2649
    %3016 = vmatpush1.bf16.msra.mxu0 %v2648
    %3017 = vmatprep.subr.bf16.mxu0 %v2643
    %3018 = vmatpush1.bf16.msra.mxu0 %v2642
    %3019 = vmatprep.subr.bf16.mxu0 %v2637
    %3020 = vmatpush1.bf16.msra.mxu0 %v2636
    %3021 = vmatprep.subr.bf16.mxu0 %v2631
    %3022 = vmatpush1.bf16.msra.mxu0 %v2630
    %3023 = vmatprep.subr.bf16.mxu0 %v2625
    %3024 = vmatpush1.bf16.msra.mxu0 %v2624
    %3025 = vmatprep.subr.bf16.mxu0 %v2619
    %3026 = vmatpush1.bf16.msra.mxu0 %v2618
    %3027 = vmatprep.subr.bf16.mxu0 %v2613
    %3028 = vmatpush1.bf16.msra.mxu0 %v2612
    %3029 = vmatprep.subr.bf16.mxu0 %v2607
    %3030 = vmatpush1.bf16.msra.mxu0 %v2606
    %3031 = vmatprep.subr.bf16.mxu0 %v2697
    %3032 = vmatpush2.bf16.msra.mxu0 %v2696
    %3033 = vmatprep.subr.bf16.mxu0 %v2691
    %3034 = vmatpush2.bf16.msra.mxu0 %v2690
    %3035 = vmatprep.subr.bf16.mxu0 %v2685
    %3036 = vmatpush2.bf16.msra.mxu0 %v2684
    %3037 = vmatprep.subr.bf16.mxu0 %v2679
    %3038 = vmatpush2.bf16.msra.mxu0 %v2678
    %3039 = vmatprep.subr.bf16.mxu0 %v2673
    %3040 = vmatpush2.bf16.msra.mxu0 %v2672
    %3041 = vmatprep.subr.bf16.mxu0 %v2667
    %3042 = vmatpush2.bf16.msra.mxu0 %v2666
    %3043 = vmatprep.subr.bf16.mxu0 %v2661
    %3044 = vmatpush2.bf16.msra.mxu0 %v2660
    %3045 = vmatprep.subr.bf16.mxu0 %v2655
    %3046 = vmatpush2.bf16.msra.mxu0 %v2654
    %3047 = vmatprep.mubr.bf16.mxu0 %v1707
    %3048 = vmatmul.mubr.bf16.gmra.mxu0 %v1706
    %v3049 = vpop.f32.mrf.mxu0
    %v3050 = vadd.f32 %v3009, %v3049
    %v3051 = vpop.f32.mrf.mxu0
    %v3052 = vadd.f32 %v3011, %v3051
    %v3053 = vpop.f32.mrf.mxu0
    %v3054 = vpop.f32.mrf.mxu0
    %3055 = vdwg.mxu0
    %3056 = vmatprep.subr.bf16.mxu0 %v2555
    %3057 = vmatpush1.bf16.msra.mxu0 %v2554
    %3058 = vmatprep.subr.bf16.mxu0 %v2549
    %3059 = vmatpush1.bf16.msra.mxu0 %v2548
    %3060 = vmatprep.subr.bf16.mxu0 %v2543
    %3061 = vmatpush1.bf16.msra.mxu0 %v2542
    %3062 = vmatprep.subr.bf16.mxu0 %v2537
    %3063 = vmatpush1.bf16.msra.mxu0 %v2536
    %3064 = vmatprep.subr.bf16.mxu0 %v2531
    %3065 = vmatpush1.bf16.msra.mxu0 %v2530
    %3066 = vmatprep.subr.bf16.mxu0 %v2525
    %3067 = vmatpush1.bf16.msra.mxu0 %v2524
    %3068 = vmatprep.subr.bf16.mxu0 %v2519
    %3069 = vmatpush1.bf16.msra.mxu0 %v2518
    %3070 = vmatprep.subr.bf16.mxu0 %v2513
    %3071 = vmatpush1.bf16.msra.mxu0 %v2512
    %3072 = vmatprep.subr.bf16.mxu0 %v2603
    %3073 = vmatpush2.bf16.msra.mxu0 %v2602
    %3074 = vmatprep.subr.bf16.mxu0 %v2597
    %3075 = vmatpush2.bf16.msra.mxu0 %v2596
    %3076 = vmatprep.subr.bf16.mxu0 %v2591
    %3077 = vmatpush2.bf16.msra.mxu0 %v2590
    %3078 = vmatprep.subr.bf16.mxu0 %v2585
    %3079 = vmatpush2.bf16.msra.mxu0 %v2584
    %3080 = vmatprep.subr.bf16.mxu0 %v2579
    %3081 = vmatpush2.bf16.msra.mxu0 %v2578
    %3082 = vmatprep.subr.bf16.mxu0 %v2573
    %3083 = vmatpush2.bf16.msra.mxu0 %v2572
    %3084 = vmatprep.subr.bf16.mxu0 %v2567
    %3085 = vmatpush2.bf16.msra.mxu0 %v2566
    %3086 = vmatprep.subr.bf16.mxu0 %v2561
    %3087 = vmatpush2.bf16.msra.mxu0 %v2560
    %3088 = vmatprep.mubr.bf16.mxu0 %v1705
    %3089 = vmatmul.mubr.bf16.gmra.mxu0 %v1704
    %v3090 = vpop.f32.mrf.mxu0
    %v3091 = vadd.f32 %v1921, %v3090
    %v3092 = vpop.f32.mrf.mxu0
    %v3093 = vadd.f32 %v1925, %v3092
    %v3094 = vpop.f32.mrf.mxu0
    %v3095 = vpop.f32.mrf.mxu0
    %3096 = vdwg.mxu0
    %3097 = vmatprep.subr.bf16.mxu0 %v2651
    %3098 = vmatpush1.bf16.msra.mxu0 %v2650
    %3099 = vmatprep.subr.bf16.mxu0 %v2645
    %3100 = vmatpush1.bf16.msra.mxu0 %v2644
    %3101 = vmatprep.subr.bf16.mxu0 %v2639
    %3102 = vmatpush1.bf16.msra.mxu0 %v2638
    %3103 = vmatprep.subr.bf16.mxu0 %v2633
    %3104 = vmatpush1.bf16.msra.mxu0 %v2632
    %3105 = vmatprep.subr.bf16.mxu0 %v2627
    %3106 = vmatpush1.bf16.msra.mxu0 %v2626
    %3107 = vmatprep.subr.bf16.mxu0 %v2621
    %3108 = vmatpush1.bf16.msra.mxu0 %v2620
    %3109 = vmatprep.subr.bf16.mxu0 %v2615
    %3110 = vmatpush1.bf16.msra.mxu0 %v2614
    %3111 = vmatprep.subr.bf16.mxu0 %v2609
    %3112 = vmatpush1.bf16.msra.mxu0 %v2608
    %3113 = vmatprep.subr.bf16.mxu0 %v2699
    %3114 = vmatpush2.bf16.msra.mxu0 %v2698
    %3115 = vmatprep.subr.bf16.mxu0 %v2693
    %3116 = vmatpush2.bf16.msra.mxu0 %v2692
    %3117 = vmatprep.subr.bf16.mxu0 %v2687
    %3118 = vmatpush2.bf16.msra.mxu0 %v2686
    %3119 = vmatprep.subr.bf16.mxu0 %v2681
    %3120 = vmatpush2.bf16.msra.mxu0 %v2680
    %3121 = vmatprep.subr.bf16.mxu0 %v2675
    %3122 = vmatpush2.bf16.msra.mxu0 %v2674
    %3123 = vmatprep.subr.bf16.mxu0 %v2669
    %3124 = vmatpush2.bf16.msra.mxu0 %v2668
    %3125 = vmatprep.subr.bf16.mxu0 %v2663
    %3126 = vmatpush2.bf16.msra.mxu0 %v2662
    %3127 = vmatprep.subr.bf16.mxu0 %v2657
    %3128 = vmatpush2.bf16.msra.mxu0 %v2656
    %3129 = vmatprep.mubr.bf16.mxu0 %v1707
    %3130 = vmatmul.mubr.bf16.gmra.mxu0 %v1706
    %v3131 = vpop.f32.mrf.mxu0
    %v3132 = vadd.f32 %v3091, %v3131
    %v3133 = vpop.f32.mrf.mxu0
    %v3134 = vadd.f32 %v3093, %v3133
    %v3135 = vpop.f32.mrf.mxu0
    %v3136 = vpop.f32.mrf.mxu0
    %3137 = vdwg.mxu0
    %v3138 = vmax.f32 %v2968, 0.0
    %v3139 = vmax.f32 %v2970, 0.0
    %v3140 = vmax.f32 %v3050, 0.0
    %v3141 = vmax.f32 %v3052, 0.0
    %v3142 = vmax.f32 %v3132, 0.0
    %v3143 = vmax.f32 %v3134, 0.0
    %v3144 = vpack.c.bf16 %v3138, %v3138
    %v3145 = vpack.c.bf16 %v3139, %v3139
    %v3146 = vpack.c.bf16 %v3140, %v3140
    %v3147 = vpack.c.bf16 %v3141, %v3141
    %v3148 = vpack.c.bf16 %v3142, %v3142
    %v3149 = vpack.c.bf16 %v3143, %v3143
    %v3150 = vld [vmem:[#allocation7] sm:$0xf]
    %v3151 = vld [vmem:[#allocation7 + $0x4] sm:$0xf]
    %v3152 = vld [vmem:[#allocation7 + $0x8] sm:$0xf]
    %v3153 = vld [vmem:[#allocation7 + $0xc] sm:$0xf]
    %v3154 = vld [vmem:[#allocation7 + $0x10] sm:$0xf]
    %v3155 = vld [vmem:[#allocation7 + $0x14] sm:$0xf]
    %v3156 = vld [vmem:[#allocation7 + $0x18] sm:$0xf]
    %v3157 = vld [vmem:[#allocation7 + $0x1c] sm:$0xf]
    %v3158 = vld [vmem:[#allocation7 + $0x20] sm:$0xf]
    %v3159 = vld [vmem:[#allocation7 + $0x24] sm:$0xf]
    %v3160 = vld [vmem:[#allocation7 + $0x28] sm:$0xf]
    %v3161 = vld [vmem:[#allocation7 + $0x2c] sm:$0xf]
    %v3162 = vld [vmem:[#allocation7 + $0x30] sm:$0xf]
    %v3163 = vld [vmem:[#allocation7 + $0x34] sm:$0xf]
    %v3164 = vld [vmem:[#allocation7 + $0x38] sm:$0xf]
    %v3165 = vld [vmem:[#allocation7 + $0x3c] sm:$0xf]
    %v3166 = vld [vmem:[#allocation7 + $0x40] sm:$0xf]
    %v3167 = vld [vmem:[#allocation7 + $0x44] sm:$0xf]
    %v3168 = vld [vmem:[#allocation7 + $0x48] sm:$0xf]
    %v3169 = vld [vmem:[#allocation7 + $0x4c] sm:$0xf]
    %v3170 = vld [vmem:[#allocation7 + $0x50] sm:$0xf]
    %v3171 = vld [vmem:[#allocation7 + $0x54] sm:$0xf]
    %v3172 = vld [vmem:[#allocation7 + $0x58] sm:$0xf]
    %v3173 = vld [vmem:[#allocation7 + $0x5c] sm:$0xf]
    %v3174 = vld [vmem:[#allocation7 + $0x60] sm:$0xf]
    %v3175 = vld [vmem:[#allocation7 + $0x64] sm:$0xf]
    %v3176 = vld [vmem:[#allocation7 + $0x68] sm:$0xf]
    %v3177 = vld [vmem:[#allocation7 + $0x6c] sm:$0xf]
    %v3178 = vld [vmem:[#allocation7 + $0x70] sm:$0xf]
    %v3179 = vld [vmem:[#allocation7 + $0x74] sm:$0xf]
    %v3180 = vld [vmem:[#allocation7 + $0x78] sm:$0xf]
    %v3181 = vld [vmem:[#allocation7 + $0x7c] sm:$0xf]
    %v3182 = vld [vmem:[#allocation7 + $0x80] sm:$0xf]
    %v3183 = vld [vmem:[#allocation7 + $0x84] sm:$0xf]
    %v3184 = vld [vmem:[#allocation7 + $0x88] sm:$0xf]
    %v3185 = vld [vmem:[#allocation7 + $0x8c] sm:$0xf]
    %v3186 = vld [vmem:[#allocation7 + $0x90] sm:$0xf]
    %v3187 = vld [vmem:[#allocation7 + $0x94] sm:$0xf]
    %v3188 = vld [vmem:[#allocation7 + $0x98] sm:$0xf]
    %v3189 = vld [vmem:[#allocation7 + $0x9c] sm:$0xf]
    %v3190 = vld [vmem:[#allocation7 + $0xa0] sm:$0xf]
    %v3191 = vld [vmem:[#allocation7 + $0xa4] sm:$0xf]
    %v3192 = vld [vmem:[#allocation7 + $0xa8] sm:$0xf]
    %v3193 = vld [vmem:[#allocation7 + $0xac] sm:$0xf]
    %v3194 = vld [vmem:[#allocation7 + $0xb0] sm:$0xf]
    %v3195 = vld [vmem:[#allocation7 + $0xb4] sm:$0xf]
    %v3196 = vld [vmem:[#allocation7 + $0xb8] sm:$0xf]
    %v3197 = vld [vmem:[#allocation7 + $0xbc] sm:$0xf]
    %v3198 = vld [vmem:[#allocation7 + $0xc0] sm:$0xf]
    %v3199 = vld [vmem:[#allocation7 + $0xc4] sm:$0xf]
    %v3200 = vld [vmem:[#allocation7 + $0xc8] sm:$0xf]
    %v3201 = vld [vmem:[#allocation7 + $0xcc] sm:$0xf]
    %v3202 = vld [vmem:[#allocation7 + $0xd0] sm:$0xf]
    %v3203 = vld [vmem:[#allocation7 + $0xd4] sm:$0xf]
    %v3204 = vld [vmem:[#allocation7 + $0xd8] sm:$0xf]
    %v3205 = vld [vmem:[#allocation7 + $0xdc] sm:$0xf]
    %v3206 = vld [vmem:[#allocation7 + $0xe0] sm:$0xf]
    %v3207 = vld [vmem:[#allocation7 + $0xe4] sm:$0xf]
    %v3208 = vld [vmem:[#allocation7 + $0xe8] sm:$0xf]
    %v3209 = vld [vmem:[#allocation7 + $0xec] sm:$0xf]
    %v3210 = vld [vmem:[#allocation7 + $0xf0] sm:$0xf]
    %v3211 = vld [vmem:[#allocation7 + $0xf4] sm:$0xf]
    %v3212 = vld [vmem:[#allocation7 + $0xf8] sm:$0xf]
    %v3213 = vld [vmem:[#allocation7 + $0xfc] sm:$0xf]
    %v3214 = vld [vmem:[#allocation7 + $0x100] sm:$0xf]
    %v3215 = vld [vmem:[#allocation7 + $0x104] sm:$0xf]
    %v3216 = vld [vmem:[#allocation7 + $0x108] sm:$0xf]
    %v3217 = vld [vmem:[#allocation7 + $0x10c] sm:$0xf]
    %v3218 = vld [vmem:[#allocation7 + $0x110] sm:$0xf]
    %v3219 = vld [vmem:[#allocation7 + $0x114] sm:$0xf]
    %v3220 = vld [vmem:[#allocation7 + $0x118] sm:$0xf]
    %v3221 = vld [vmem:[#allocation7 + $0x11c] sm:$0xf]
    %v3222 = vld [vmem:[#allocation7 + $0x120] sm:$0xf]
    %v3223 = vld [vmem:[#allocation7 + $0x124] sm:$0xf]
    %v3224 = vld [vmem:[#allocation7 + $0x128] sm:$0xf]
    %v3225 = vld [vmem:[#allocation7 + $0x12c] sm:$0xf]
    %v3226 = vld [vmem:[#allocation7 + $0x130] sm:$0xf]
    %v3227 = vld [vmem:[#allocation7 + $0x134] sm:$0xf]
    %v3228 = vld [vmem:[#allocation7 + $0x138] sm:$0xf]
    %v3229 = vld [vmem:[#allocation7 + $0x13c] sm:$0xf]
    %v3230 = vld [vmem:[#allocation7 + $0x140] sm:$0xf]
    %v3231 = vld [vmem:[#allocation7 + $0x144] sm:$0xf]
    %v3232 = vld [vmem:[#allocation7 + $0x148] sm:$0xf]
    %v3233 = vld [vmem:[#allocation7 + $0x14c] sm:$0xf]
    %v3234 = vld [vmem:[#allocation7 + $0x150] sm:$0xf]
    %v3235 = vld [vmem:[#allocation7 + $0x154] sm:$0xf]
    %v3236 = vld [vmem:[#allocation7 + $0x158] sm:$0xf]
    %v3237 = vld [vmem:[#allocation7 + $0x15c] sm:$0xf]
    %v3238 = vld [vmem:[#allocation7 + $0x160] sm:$0xf]
    %v3239 = vld [vmem:[#allocation7 + $0x164] sm:$0xf]
    %v3240 = vld [vmem:[#allocation7 + $0x168] sm:$0xf]
    %v3241 = vld [vmem:[#allocation7 + $0x16c] sm:$0xf]
    %v3242 = vld [vmem:[#allocation7 + $0x170] sm:$0xf]
    %v3243 = vld [vmem:[#allocation7 + $0x174] sm:$0xf]
    %v3244 = vld [vmem:[#allocation7 + $0x178] sm:$0xf]
    %v3245 = vld [vmem:[#allocation7 + $0x17c] sm:$0xf]
    %v3246 = vld [vmem:[%s6] sm:$0x1]
    %v3248 = vlaneseq
    %v3249 = vshrl.u32 %v3248, 7
    %v3250 = vsub.s32 0, %v3249
    %v3251 = vrot.slane %v3246, %v3250
    %v3349 = vunpack.c.l.b16 %v3150
    %v3350 = vunpack.c.l.b16 %v3151
    %v3351 = vunpack.c.l.b16 %v3152
    %v3352 = vunpack.c.l.b16 %v3153
    %v3353 = vunpack.c.l.b16 %v3154
    %v3354 = vunpack.c.l.b16 %v3155
    %v3355 = vunpack.c.l.b16 %v3156
    %v3356 = vunpack.c.l.b16 %v3157
    %v3357 = vunpack.c.l.b16 %v3158
    %v3358 = vunpack.c.l.b16 %v3159
    %v3359 = vunpack.c.l.b16 %v3160
    %v3360 = vunpack.c.l.b16 %v3161
    %v3361 = vunpack.c.l.b16 %v3162
    %v3362 = vunpack.c.l.b16 %v3163
    %v3363 = vunpack.c.l.b16 %v3164
    %v3364 = vunpack.c.l.b16 %v3165
    %v3365 = vunpack.c.l.b16 %v3166
    %v3366 = vunpack.c.l.b16 %v3167
    %v3367 = vunpack.c.l.b16 %v3168
    %v3368 = vunpack.c.l.b16 %v3169
    %v3369 = vunpack.c.l.b16 %v3170
    %v3370 = vunpack.c.l.b16 %v3171
    %v3371 = vunpack.c.l.b16 %v3172
    %v3372 = vunpack.c.l.b16 %v3173
    %v3373 = vunpack.c.l.b16 %v3174
    %v3374 = vunpack.c.l.b16 %v3175
    %v3375 = vunpack.c.l.b16 %v3176
    %v3376 = vunpack.c.l.b16 %v3177
    %v3377 = vunpack.c.l.b16 %v3178
    %v3378 = vunpack.c.l.b16 %v3179
    %v3379 = vunpack.c.l.b16 %v3180
    %v3380 = vunpack.c.l.b16 %v3181
    %v3381 = vunpack.c.l.b16 %v3182
    %v3382 = vunpack.c.l.b16 %v3183
    %v3383 = vunpack.c.l.b16 %v3184
    %v3384 = vunpack.c.l.b16 %v3185
    %v3385 = vunpack.c.l.b16 %v3186
    %v3386 = vunpack.c.l.b16 %v3187
    %v3387 = vunpack.c.l.b16 %v3188
    %v3388 = vunpack.c.l.b16 %v3189
    %v3389 = vunpack.c.l.b16 %v3190
    %v3390 = vunpack.c.l.b16 %v3191
    %v3391 = vunpack.c.l.b16 %v3192
    %v3392 = vunpack.c.l.b16 %v3193
    %v3393 = vunpack.c.l.b16 %v3194
    %v3394 = vunpack.c.l.b16 %v3195
    %v3395 = vunpack.c.l.b16 %v3196
    %v3396 = vunpack.c.l.b16 %v3197
    %v3397 = vunpack.c.l.b16 %v3198
    %v3398 = vunpack.c.l.b16 %v3199
    %v3399 = vunpack.c.l.b16 %v3200
    %v3400 = vunpack.c.l.b16 %v3201
    %v3401 = vunpack.c.l.b16 %v3202
    %v3402 = vunpack.c.l.b16 %v3203
    %v3403 = vunpack.c.l.b16 %v3204
    %v3404 = vunpack.c.l.b16 %v3205
    %v3405 = vunpack.c.l.b16 %v3206
    %v3406 = vunpack.c.l.b16 %v3207
    %v3407 = vunpack.c.l.b16 %v3208
    %v3408 = vunpack.c.l.b16 %v3209
    %v3409 = vunpack.c.l.b16 %v3210
    %v3410 = vunpack.c.l.b16 %v3211
    %v3411 = vunpack.c.l.b16 %v3212
    %v3412 = vunpack.c.l.b16 %v3213
    %v3413 = vunpack.c.l.b16 %v3214
    %v3414 = vunpack.c.l.b16 %v3215
    %v3415 = vunpack.c.l.b16 %v3216
    %v3416 = vunpack.c.l.b16 %v3217
    %v3417 = vunpack.c.l.b16 %v3218
    %v3418 = vunpack.c.l.b16 %v3219
    %v3419 = vunpack.c.l.b16 %v3220
    %v3420 = vunpack.c.l.b16 %v3221
    %v3421 = vunpack.c.l.b16 %v3222
    %v3422 = vunpack.c.l.b16 %v3223
    %v3423 = vunpack.c.l.b16 %v3224
    %v3424 = vunpack.c.l.b16 %v3225
    %v3425 = vunpack.c.l.b16 %v3226
    %v3426 = vunpack.c.l.b16 %v3227
    %v3427 = vunpack.c.l.b16 %v3228
    %v3428 = vunpack.c.l.b16 %v3229
    %v3429 = vunpack.c.l.b16 %v3230
    %v3430 = vunpack.c.l.b16 %v3231
    %v3431 = vunpack.c.l.b16 %v3232
    %v3432 = vunpack.c.l.b16 %v3233
    %v3433 = vunpack.c.l.b16 %v3234
    %v3434 = vunpack.c.l.b16 %v3235
    %v3435 = vunpack.c.l.b16 %v3236
    %v3436 = vunpack.c.l.b16 %v3237
    %v3437 = vunpack.c.l.b16 %v3238
    %v3438 = vunpack.c.l.b16 %v3239
    %v3439 = vunpack.c.l.b16 %v3240
    %v3440 = vunpack.c.l.b16 %v3241
    %v3441 = vunpack.c.l.b16 %v3242
    %v3442 = vunpack.c.l.b16 %v3243
    %v3443 = vunpack.c.l.b16 %v3244
    %v3444 = vunpack.c.l.b16 %v3245
    %v3445 = vpack.c.b16 %v3350, %v3349
    %v3446 = vpack.c.b16 %v3352, %v3351
    %v3447 = vpack.c.b16 %v3354, %v3353
    %v3448 = vpack.c.b16 %v3356, %v3355
    %v3449 = vpack.c.b16 %v3358, %v3357
    %v3450 = vpack.c.b16 %v3360, %v3359
    %v3451 = vpack.c.b16 %v3362, %v3361
    %v3452 = vpack.c.b16 %v3364, %v3363
    %v3453 = vpack.c.b16 %v3366, %v3365
    %v3454 = vpack.c.b16 %v3368, %v3367
    %v3455 = vpack.c.b16 %v3370, %v3369
    %v3456 = vpack.c.b16 %v3372, %v3371
    %v3457 = vpack.c.b16 %v3374, %v3373
    %v3458 = vpack.c.b16 %v3376, %v3375
    %v3459 = vpack.c.b16 %v3378, %v3377
    %v3460 = vpack.c.b16 %v3380, %v3379
    %v3461 = vpack.c.b16 %v3382, %v3381
    %v3462 = vpack.c.b16 %v3384, %v3383
    %v3463 = vpack.c.b16 %v3386, %v3385
    %v3464 = vpack.c.b16 %v3388, %v3387
    %v3465 = vpack.c.b16 %v3390, %v3389
    %v3466 = vpack.c.b16 %v3392, %v3391
    %v3467 = vpack.c.b16 %v3394, %v3393
    %v3468 = vpack.c.b16 %v3396, %v3395
    %v3469 = vpack.c.b16 %v3398, %v3397
    %v3470 = vpack.c.b16 %v3400, %v3399
    %v3471 = vpack.c.b16 %v3402, %v3401
    %v3472 = vpack.c.b16 %v3404, %v3403
    %v3473 = vpack.c.b16 %v3406, %v3405
    %v3474 = vpack.c.b16 %v3408, %v3407
    %v3475 = vpack.c.b16 %v3410, %v3409
    %v3476 = vpack.c.b16 %v3412, %v3411
    %v3477 = vpack.c.b16 %v3414, %v3413
    %v3478 = vpack.c.b16 %v3416, %v3415
    %v3479 = vpack.c.b16 %v3418, %v3417
    %v3480 = vpack.c.b16 %v3420, %v3419
    %v3481 = vpack.c.b16 %v3422, %v3421
    %v3482 = vpack.c.b16 %v3424, %v3423
    %v3483 = vpack.c.b16 %v3426, %v3425
    %v3484 = vpack.c.b16 %v3428, %v3427
    %v3485 = vpack.c.b16 %v3430, %v3429
    %v3486 = vpack.c.b16 %v3432, %v3431
    %v3487 = vpack.c.b16 %v3434, %v3433
    %v3488 = vpack.c.b16 %v3436, %v3435
    %v3489 = vpack.c.b16 %v3438, %v3437
    %v3490 = vpack.c.b16 %v3440, %v3439
    %v3491 = vpack.c.b16 %v3442, %v3441
    %v3492 = vpack.c.b16 %v3444, %v3443
    %3541 = vmatprep.subr.bf16.mxu0 0
    %3542 = vmatpush1.bf16.msra.mxu0 %v3452
    %3543 = vmatprep.subr.bf16.mxu0 0
    %3544 = vmatpush1.bf16.msra.mxu0 %v3451
    %3545 = vmatprep.subr.bf16.mxu0 0
    %3546 = vmatpush1.bf16.msra.mxu0 %v3450
    %3547 = vmatprep.subr.bf16.mxu0 0
    %3548 = vmatpush1.bf16.msra.mxu0 %v3449
    %3549 = vmatprep.subr.bf16.mxu0 0
    %3550 = vmatpush1.bf16.msra.mxu0 %v3448
    %3551 = vmatprep.subr.bf16.mxu0 0
    %3552 = vmatpush1.bf16.msra.mxu0 %v3447
    %3553 = vmatprep.subr.bf16.mxu0 0
    %3554 = vmatpush1.bf16.msra.mxu0 %v3446
    %3555 = vmatprep.subr.bf16.mxu0 0
    %3556 = vmatpush1.bf16.msra.mxu0 %v3445
    %3557 = vmatprep.subr.bf16.mxu0 0
    %3558 = vmatpush2.bf16.msra.mxu0 %v3460
    %3559 = vmatprep.subr.bf16.mxu0 0
    %3560 = vmatpush2.bf16.msra.mxu0 %v3459
    %3561 = vmatprep.subr.bf16.mxu0 0
    %3562 = vmatpush2.bf16.msra.mxu0 %v3458
    %3563 = vmatprep.subr.bf16.mxu0 0
    %3564 = vmatpush2.bf16.msra.mxu0 %v3457
    %3565 = vmatprep.subr.bf16.mxu0 0
    %3566 = vmatpush2.bf16.msra.mxu0 %v3456
    %3567 = vmatprep.subr.bf16.mxu0 0
    %3568 = vmatpush2.bf16.msra.mxu0 %v3455
    %3569 = vmatprep.subr.bf16.mxu0 0
    %3570 = vmatpush2.bf16.msra.mxu0 %v3454
    %3571 = vmatprep.subr.bf16.mxu0 0
    %3572 = vmatpush2.bf16.msra.mxu0 %v3453
    %3573 = vmatprep.mubr.bf16.mxu0 %v3145
    %3574 = vmatmul.mubr.bf16.gmra.mxu0 %v3144
    %v3575 = vpop.f32.mrf.mxu0
    %v3576 = vadd.f32 %v3251, %v3575
    %v3577 = vpop.f32.mrf.mxu0
    %v3578 = vpop.f32.mrf.mxu0
    %v3579 = vpop.f32.mrf.mxu0
    %3580 = vdwg.mxu0
    %3581 = vmatprep.subr.bf16.mxu0 0
    %3582 = vmatpush1.bf16.msra.mxu0 %v3468
    %3583 = vmatprep.subr.bf16.mxu0 0
    %3584 = vmatpush1.bf16.msra.mxu0 %v3467
    %3585 = vmatprep.subr.bf16.mxu0 0
    %3586 = vmatpush1.bf16.msra.mxu0 %v3466
    %3587 = vmatprep.subr.bf16.mxu0 0
    %3588 = vmatpush1.bf16.msra.mxu0 %v3465
    %3589 = vmatprep.subr.bf16.mxu0 0
    %3590 = vmatpush1.bf16.msra.mxu0 %v3464
    %3591 = vmatprep.subr.bf16.mxu0 0
    %3592 = vmatpush1.bf16.msra.mxu0 %v3463
    %3593 = vmatprep.subr.bf16.mxu0 0
    %3594 = vmatpush1.bf16.msra.mxu0 %v3462
    %3595 = vmatprep.subr.bf16.mxu0 0
    %3596 = vmatpush1.bf16.msra.mxu0 %v3461
    %3597 = vmatprep.subr.bf16.mxu0 0
    %3598 = vmatpush2.bf16.msra.mxu0 %v3476
    %3599 = vmatprep.subr.bf16.mxu0 0
    %3600 = vmatpush2.bf16.msra.mxu0 %v3475
    %3601 = vmatprep.subr.bf16.mxu0 0
    %3602 = vmatpush2.bf16.msra.mxu0 %v3474
    %3603 = vmatprep.subr.bf16.mxu0 0
    %3604 = vmatpush2.bf16.msra.mxu0 %v3473
    %3605 = vmatprep.subr.bf16.mxu0 0
    %3606 = vmatpush2.bf16.msra.mxu0 %v3472
    %3607 = vmatprep.subr.bf16.mxu0 0
    %3608 = vmatpush2.bf16.msra.mxu0 %v3471
    %3609 = vmatprep.subr.bf16.mxu0 0
    %3610 = vmatpush2.bf16.msra.mxu0 %v3470
    %3611 = vmatprep.subr.bf16.mxu0 0
    %3612 = vmatpush2.bf16.msra.mxu0 %v3469
    %3613 = vmatprep.mubr.bf16.mxu0 %v3147
    %3614 = vmatmul.mubr.bf16.gmra.mxu0 %v3146
    %v3615 = vpop.f32.mrf.mxu0
    %v3616 = vadd.f32 %v3576, %v3615
    %v3617 = vpop.f32.mrf.mxu0
    %v3618 = vpop.f32.mrf.mxu0
    %v3619 = vpop.f32.mrf.mxu0
    %3620 = vdwg.mxu0
    %3621 = vmatprep.subr.bf16.mxu0 0
    %3622 = vmatpush1.bf16.msra.mxu0 %v3484
    %3623 = vmatprep.subr.bf16.mxu0 0
    %3624 = vmatpush1.bf16.msra.mxu0 %v3483
    %3625 = vmatprep.subr.bf16.mxu0 0
    %3626 = vmatpush1.bf16.msra.mxu0 %v3482
    %3627 = vmatprep.subr.bf16.mxu0 0
    %3628 = vmatpush1.bf16.msra.mxu0 %v3481
    %3629 = vmatprep.subr.bf16.mxu0 0
    %3630 = vmatpush1.bf16.msra.mxu0 %v3480
    %3631 = vmatprep.subr.bf16.mxu0 0
    %3632 = vmatpush1.bf16.msra.mxu0 %v3479
    %3633 = vmatprep.subr.bf16.mxu0 0
    %3634 = vmatpush1.bf16.msra.mxu0 %v3478
    %3635 = vmatprep.subr.bf16.mxu0 0
    %3636 = vmatpush1.bf16.msra.mxu0 %v3477
    %3637 = vmatprep.subr.bf16.mxu0 0
    %3638 = vmatpush2.bf16.msra.mxu0 %v3492
    %3639 = vmatprep.subr.bf16.mxu0 0
    %3640 = vmatpush2.bf16.msra.mxu0 %v3491
    %3641 = vmatprep.subr.bf16.mxu0 0
    %3642 = vmatpush2.bf16.msra.mxu0 %v3490
    %3643 = vmatprep.subr.bf16.mxu0 0
    %3644 = vmatpush2.bf16.msra.mxu0 %v3489
    %3645 = vmatprep.subr.bf16.mxu0 0
    %3646 = vmatpush2.bf16.msra.mxu0 %v3488
    %3647 = vmatprep.subr.bf16.mxu0 0
    %3648 = vmatpush2.bf16.msra.mxu0 %v3487
    %3649 = vmatprep.subr.bf16.mxu0 0
    %3650 = vmatpush2.bf16.msra.mxu0 %v3486
    %3651 = vmatprep.subr.bf16.mxu0 0
    %3652 = vmatpush2.bf16.msra.mxu0 %v3485
    %3653 = vmatprep.mubr.bf16.mxu0 %v3149
    %3654 = vmatmul.mubr.bf16.gmra.mxu0 %v3148
    %v3655 = vpop.f32.mrf.mxu0
    %v3656 = vadd.f32 %v3616, %v3655
    %v3657 = vpop.f32.mrf.mxu0
    %v3658 = vpop.f32.mrf.mxu0
    %v3659 = vpop.f32.mrf.mxu0
    %3660 = vdwg.mxu0
    %3661 = vmax.xlane.f32.xlu0 %v3656
    %v3662 = vpop.xlane.xlu0 %3661
    %v3663 = vsub.f32 %v3656, %v3662
    %v3664 = vmul.f32 %v3663, 1.442695
    %v3665 = vpow.pop %v3664
    %3666 = vadd.xlane.f32.xlu0 %v3665
    %v3667 = vpop.xlane.xlu0 %3666
    %v3668 = vrcp.pop %v3667
    %v3669 = vmul.f32 %v3665, %v3668
    %3670 = vst [vmem:[#allocation8] sm:$0xff] %v3669
    // Predicated region
    $region42: #{linear_network_forward.1} parent=1 // pred_check
      _
    $region43: #{linear_network_forward.1} parent=1 // pred_check_branch
      %3672 = sbr.rel (0) target = $region45
    $region44: #{linear_network_forward.1} parent=1 // pred_region
      %s3674 = ssub.s32 128, 32
      %3675 = vsyncadd [#allocation4], %s3674
      %s3676 = sshll.u32 [#allocation8], 4
      %s3677 = int_to_ptr.vmem [resolvable:$true] %s3676
      %3682 = dma.vmem_to_hbm [thread:$0]  %s3677, 32, %s7, [#allocation4], 32, 32, 2
    $region45: #{linear_network_forward.1} parent=1 // pred_fallthru
      _
    // Predicated region
    $region46: #{linear_network_forward.1} parent=1 // pred_check
      _
    $region47: #{linear_network_forward.1} parent=1 // pred_check_branch
      %3684 = sbr.rel (0) target = $region49
    $region48: #{linear_network_forward.1} parent=1 // pred_region
      %3685 = dma.done [#allocation4], 128
    $region49: #{linear_network_forward.1} parent=1 // pred_fallthru
      _
    %3686 = vsyncpa [#allocation3], 1
    %3687 = vsyncpa [#allocation6], 1
    %3688 = vsyncpa [#allocation4], 1

</llo_original>
